<compile_context>
chip_gen: v6e
topology: v6e:2x2x1
jax: 0.10.0
libtpu: 0.0.40
codegen_flags: <defaults>
</compile_context>

<pallas_src>
import functools

import jax
import jax.numpy as jnp
from jax.experimental import pallas as pl
from jax.experimental.pallas import tpu as pltpu


def _actor_kernel(state_ref, w1_ref, b1_ref, w2_ref, b2_ref, w3_ref, b3_ref,
                  out_ref, s1_buf, *, T, B, max_action, tau):
    inv_tau = 1.0 / tau
    tau_is_2 = (tau == 2.0)

    # Layer-1 pre-activation is identical at every timestep (same input state),
    # so compute it once.
    h1 = (jnp.dot(state_ref[...], w1_ref[...],
                  preferred_element_type=jnp.float32) + b1_ref[...])

    # ---- Phase 1: layer-1 LIF recurrence (VPU only). ------------------------
    # Depends only on the constant h1, so all T spike vectors can be produced
    # up front and stacked into a [T*B, H] slab for one fused MXU call.
    v1 = jnp.zeros_like(h1)
    for t in range(T):                        # trace-time unrolled, T is small
        if tau_is_2:
            v1 = 0.5 * (v1 + h1)              # charge (tau==2 fast path)
        else:
            v1 = v1 + (h1 - v1) * inv_tau     # charge (generic)
        fire1 = v1 >= 1.0                     # fire
        s1 = jnp.where(fire1, 1.0, 0.0)
        v1 = jnp.where(fire1, 0.0, v1)        # hard reset (v_reset = 0)
        s1_buf[pl.ds(t * B, B), :] = s1

    # ---- Phase 2: all T layer-2 pre-activations in ONE MXU call. ------------
    # Kept as a value (no VMEM round-trip) so result pops interleave with the
    # Phase-3 VPU loop.
    h2_all = (jnp.dot(s1_buf[...], w2_ref[...],
                      preferred_element_type=jnp.float32) + b2_ref[...])

    # ---- Phase 3: layer-2 LIF recurrence + decayed spike accumulator. -------
    # NonSpikingLIF(tau=2) is linear:
    #   v3_T = (sum_t 0.5^(T-t) * s2_t) @ w3 + (1 - 0.5^T) * b3
    # so only a decayed sum of s2 spikes (pure VPU) is needed in the loop.
    v2 = jnp.zeros_like(h1)
    acc = jnp.zeros_like(h1)
    for t in range(T):
        h2 = h2_all[t * B:(t + 1) * B, :]     # static slice of the live value
        if tau_is_2:
            v2 = 0.5 * (v2 + h2)
        else:
            v2 = v2 + (h2 - v2) * inv_tau
        fire2 = v2 >= 1.0
        s2 = jnp.where(fire2, 1.0, 0.0)
        v2 = jnp.where(fire2, 0.0, v2)
        acc = 0.5 * (acc + s2)                # exact: non-spiking tau fixed = 2

    # ---- Layer-3 matmul hoisted out of the time loop. -----------------------
    v3 = (jnp.dot(acc, w3_ref[...], preferred_element_type=jnp.float32)
          + (1.0 - 0.5 ** T) * b3_ref[...])
    out_ref[...] = max_action * jnp.tanh(v3)


def actor_forward(state, params, *, T=16, max_action=1.0, tau=2.0):
    """state: [B, S] float32; params: dict of w1,b1,w2,b2,w3,b3."""
    B, S = state.shape
    H = params["w1"].shape[1]
    A = params["w3"].shape[1]

    # Pad batch to a multiple of 8 so per-timestep slabs in the [T*B, H]
    # scratch buffer are sublane-tile aligned.
    B_pad = max(8, ((B + 7) // 8) * 8)
    state_p = state if B_pad == B else jnp.pad(state, ((0, B_pad - B), (0, 0)))

    # Pad the action dim to a full lane tile (128) so the output store / DMA is
    # an unmasked lane-dense full tile.  Padded columns use zero weights/bias
    # and are sliced off below.
    A_pad = max(128, ((A + 127) // 128) * 128)
    w3 = params["w3"]
    b3 = params["b3"]
    if A_pad != A:
        w3 = jnp.pad(w3, ((0, 0), (0, A_pad - A)))
        b3 = jnp.pad(b3, ((0, 0), (0, A_pad - A)))

    kernel = functools.partial(_actor_kernel, T=T, B=B_pad,
                               max_action=max_action, tau=tau)

    full = lambda shape: pl.BlockSpec(shape, lambda i: (0,) * len(shape))

    out = pl.pallas_call(
        kernel,
        out_shape=jax.ShapeDtypeStruct((B_pad, A_pad), jnp.float32),
        grid=(1,),
        in_specs=[
            full((B_pad, S)),
            full((S, H)), full((1, H)),
            full((H, H)), full((1, H)),
            full((H, A_pad)), full((1, A_pad)),
        ],
        out_specs=full((B_pad, A_pad)),
        scratch_shapes=[
            pltpu.VMEM((T * B_pad, H), jnp.float32),   # s1 spikes, all T steps
        ],
        compiler_params=pltpu.CompilerParams(
            dimension_semantics=("arbitrary",)),
    )(state_p, params["w1"], params["b1"], params["w2"], params["b2"],
      w3, b3)
    return out[:B, :A]


def _init_linear(key, fan_in, fan_out):
    # Deterministic init, PyTorch-style uniform(-1/sqrt(fan_in), 1/sqrt(fan_in)).
    kw, kb = jax.random.split(key)
    bound = 1.0 / (fan_in ** 0.5)
    w = jax.random.uniform(kw, (fan_in, fan_out), jnp.float32, -bound, bound)
    b = jax.random.uniform(kb, (1, fan_out), jnp.float32, -bound, bound)
    return w, b


def _reference_forward(state, params, *, T=16, max_action=1.0, tau=2.0):
    """Pure-JAX step-by-step reference of the original SNN dynamics."""
    B = state.shape[0]
    H = params["w1"].shape[1]
    A = params["w3"].shape[1]
    v1 = jnp.zeros((B, H)); v2 = jnp.zeros((B, H)); v3 = jnp.zeros((B, A))
    h1 = state @ params["w1"] + params["b1"]
    for _ in range(T):
        v1 = v1 + (h1 - v1) / tau
        s1 = (v1 >= 1.0).astype(jnp.float32)
        v1 = v1 * (1.0 - s1)
        h2 = s1 @ params["w2"] + params["b2"]
        v2 = v2 + (h2 - v2) / tau
        s2 = (v2 >= 1.0).astype(jnp.float32)
        v2 = v2 * (1.0 - s2)
        h3 = s2 @ params["w3"] + params["b3"]
        v3 = v3 + (h3 - v3) / 2.0
    return max_action * jnp.tanh(v3)


if __name__ == "__main__":
    # Small shapes: batch=4, state_dim=16, hidden=256 (fixed by module), action_dim=8
    B, S, H, A = 4, 16, 256, 8
    T = 16
    max_action = 1.0

    key = jax.random.PRNGKey(0)
    k_state, k1, k2, k3 = jax.random.split(key, 4)

    w1, b1 = _init_linear(k1, S, H)
    w2, b2 = _init_linear(k2, H, H)
    w3, b3 = _init_linear(k3, H, A)
    params = dict(w1=w1, b1=b1, w2=w2, b2=b2, w3=w3, b3=b3)

    state = jax.random.normal(k_state, (B, S), jnp.float32)

    out = actor_forward(state, params, T=T, max_action=max_action)
    out = jax.block_until_ready(out)

    ref = _reference_forward(state, params, T=T, max_action=max_action)
    assert out.shape == (B, A)
    assert jnp.allclose(out, ref, atol=1e-5, rtol=1e-5), "mismatch vs reference"

    print("KERNEL_OK")
</pallas_src>

<mosaic_0001>
module attributes {stable_mosaic.version = 11 : i64} {
  func.func @_actor_kernel(%arg0: i32, %arg1: memref<8x16xf32, #tpu.memory_space<vmem>>, %arg2: memref<16x256xf32, #tpu.memory_space<vmem>>, %arg3: memref<1x256xf32, #tpu.memory_space<vmem>>, %arg4: memref<256x256xf32, #tpu.memory_space<vmem>>, %arg5: memref<1x256xf32, #tpu.memory_space<vmem>>, %arg6: memref<256x128xf32, #tpu.memory_space<vmem>>, %arg7: memref<1x128xf32, #tpu.memory_space<vmem>>, %arg8: memref<8x128xf32, #tpu.memory_space<vmem>>, %arg9: memref<128x256xf32, #tpu.memory_space<vmem>>) attributes {dimension_semantics = [#tpu.dimension_semantics<arbitrary>], iteration_bounds = array<i64: 1>, scalar_prefetch = 0 : i64, scratch_operands = 1 : i64, tpu.core_type = #tpu.core_type<tc>, window_params = [{pipeline_mode = #tpu.pipeline_mode<synchronous>, transform_indices = @transform_0, window_bounds = array<i64: 8, 16>}, {pipeline_mode = #tpu.pipeline_mode<synchronous>, transform_indices = @transform_1, window_bounds = array<i64: 16, 256>}, {pipeline_mode = #tpu.pipeline_mode<synchronous>, transform_indices = @transform_2, window_bounds = array<i64: 1, 256>}, {pipeline_mode = #tpu.pipeline_mode<synchronous>, transform_indices = @transform_3, window_bounds = array<i64: 256, 256>}, {pipeline_mode = #tpu.pipeline_mode<synchronous>, transform_indices = @transform_4, window_bounds = array<i64: 1, 256>}, {pipeline_mode = #tpu.pipeline_mode<synchronous>, transform_indices = @transform_5, window_bounds = array<i64: 256, 128>}, {pipeline_mode = #tpu.pipeline_mode<synchronous>, transform_indices = @transform_6, window_bounds = array<i64: 1, 128>}, {pipeline_mode = #tpu.pipeline_mode<synchronous>, transform_indices = @transform_7, window_bounds = array<i64: 8, 128>}]} {
    %c0 = arith.constant 0 : index
    %c0_0 = arith.constant 0 : index
    %0 = vector.load %arg1[%c0, %c0_0] : memref<8x16xf32, #tpu.memory_space<vmem>>, vector<8x16xf32>
    %c0_1 = arith.constant 0 : index
    %c0_2 = arith.constant 0 : index
    %1 = vector.load %arg2[%c0_1, %c0_2] : memref<16x256xf32, #tpu.memory_space<vmem>>, vector<16x256xf32>
    %cst = arith.constant dense<0.000000e+00> : vector<8x256xf32>
    %2 = tpu.matmul %0, %1, %cst {dimension_numbers = #tpu.dot_dimension_numbers<[1], [0], [0], [1], [0, 0, 1, 1], [], []>} : vector<8x16xf32>, vector<16x256xf32>, vector<8x256xf32> -> vector<8x256xf32>
    %c0_3 = arith.constant 0 : index
    %c0_4 = arith.constant 0 : index
    %3 = vector.load %arg3[%c0_3, %c0_4] : memref<1x256xf32, #tpu.memory_space<vmem>>, vector<1x256xf32>
    %4 = vector.broadcast %3 : vector<1x256xf32> to vector<8x256xf32>
    %5 = arith.addf %2, %4 : vector<8x256xf32>
    %cst_5 = arith.constant 0.000000e+00 : f32
    %6 = vector.broadcast %cst_5 : f32 to vector<8x256xf32>
    %7 = arith.addf %6, %5 : vector<8x256xf32>
    %cst_6 = arith.constant 5.000000e-01 : f32
    %8 = vector.broadcast %cst_6 : f32 to vector<8x256xf32>
    %9 = arith.mulf %8, %7 : vector<8x256xf32>
    %cst_7 = arith.constant 1.000000e+00 : f32
    %10 = vector.broadcast %cst_7 : f32 to vector<8x256xf32>
    %11 = arith.cmpf oge, %9, %10 : vector<8x256xf32>
    %cst_8 = arith.constant 1.000000e+00 : f32
    %cst_9 = arith.constant 0.000000e+00 : f32
    %12 = vector.broadcast %cst_8 : f32 to vector<8x256xf32>
    %13 = vector.broadcast %cst_9 : f32 to vector<8x256xf32>
    %14 = arith.select %11, %12, %13 : vector<8x256xi1>, vector<8x256xf32>
    %cst_10 = arith.constant 0.000000e+00 : f32
    %15 = vector.broadcast %cst_10 : f32 to vector<8x256xf32>
    %16 = arith.select %11, %15, %9 : vector<8x256xi1>, vector<8x256xf32>
    %c0_11 = arith.constant 0 : index
    %c0_12 = arith.constant 0 : index
    %17 = vector.load %arg9[%c0_11, %c0_12] : memref<128x256xf32, #tpu.memory_space<vmem>>, vector<8x256xf32>
    tpu.vector_store %arg9[%c0_11, %c0_12], %14 {strides = array<i32>} : memref<128x256xf32, #tpu.memory_space<vmem>>, vector<8x256xf32>,
    %18 = arith.addf %16, %5 : vector<8x256xf32>
    %cst_13 = arith.constant 5.000000e-01 : f32
    %19 = vector.broadcast %cst_13 : f32 to vector<8x256xf32>
    %20 = arith.mulf %19, %18 : vector<8x256xf32>
    %cst_14 = arith.constant 1.000000e+00 : f32
    %21 = vector.broadcast %cst_14 : f32 to vector<8x256xf32>
    %22 = arith.cmpf oge, %20, %21 : vector<8x256xf32>
    %cst_15 = arith.constant 1.000000e+00 : f32
    %cst_16 = arith.constant 0.000000e+00 : f32
    %23 = vector.broadcast %cst_15 : f32 to vector<8x256xf32>
    %24 = vector.broadcast %cst_16 : f32 to vector<8x256xf32>
    %25 = arith.select %22, %23, %24 : vector<8x256xi1>, vector<8x256xf32>
    %cst_17 = arith.constant 0.000000e+00 : f32
    %26 = vector.broadcast %cst_17 : f32 to vector<8x256xf32>
    %27 = arith.select %22, %26, %20 : vector<8x256xi1>, vector<8x256xf32>
    %c8 = arith.constant 8 : index
    %c0_18 = arith.constant 0 : index
    %28 = vector.load %arg9[%c8, %c0_18] : memref<128x256xf32, #tpu.memory_space<vmem>>, vector<8x256xf32>
    tpu.vector_store %arg9[%c8, %c0_18], %25 {strides = array<i32>} : memref<128x256xf32, #tpu.memory_space<vmem>>, vector<8x256xf32>,
    %29 = arith.addf %27, %5 : vector<8x256xf32>
    %cst_19 = arith.constant 5.000000e-01 : f32
    %30 = vector.broadcast %cst_19 : f32 to vector<8x256xf32>
    %31 = arith.mulf %30, %29 : vector<8x256xf32>
    %cst_20 = arith.constant 1.000000e+00 : f32
    %32 = vector.broadcast %cst_20 : f32 to vector<8x256xf32>
    %33 = arith.cmpf oge, %31, %32 : vector<8x256xf32>
    %cst_21 = arith.constant 1.000000e+00 : f32
    %cst_22 = arith.constant 0.000000e+00 : f32
    %34 = vector.broadcast %cst_21 : f32 to vector<8x256xf32>
    %35 = vector.broadcast %cst_22 : f32 to vector<8x256xf32>
    %36 = arith.select %33, %34, %35 : vector<8x256xi1>, vector<8x256xf32>
    %cst_23 = arith.constant 0.000000e+00 : f32
    %37 = vector.broadcast %cst_23 : f32 to vector<8x256xf32>
    %38 = arith.select %33, %37, %31 : vector<8x256xi1>, vector<8x256xf32>
    %c16 = arith.constant 16 : index
    %c0_24 = arith.constant 0 : index
    %39 = vector.load %arg9[%c16, %c0_24] : memref<128x256xf32, #tpu.memory_space<vmem>>, vector<8x256xf32>
    tpu.vector_store %arg9[%c16, %c0_24], %36 {strides = array<i32>} : memref<128x256xf32, #tpu.memory_space<vmem>>, vector<8x256xf32>,
    %40 = arith.addf %38, %5 : vector<8x256xf32>
    %cst_25 = arith.constant 5.000000e-01 : f32
    %41 = vector.broadcast %cst_25 : f32 to vector<8x256xf32>
    %42 = arith.mulf %41, %40 : vector<8x256xf32>
    %cst_26 = arith.constant 1.000000e+00 : f32
    %43 = vector.broadcast %cst_26 : f32 to vector<8x256xf32>
    %44 = arith.cmpf oge, %42, %43 : vector<8x256xf32>
    %cst_27 = arith.constant 1.000000e+00 : f32
    %cst_28 = arith.constant 0.000000e+00 : f32
    %45 = vector.broadcast %cst_27 : f32 to vector<8x256xf32>
    %46 = vector.broadcast %cst_28 : f32 to vector<8x256xf32>
    %47 = arith.select %44, %45, %46 : vector<8x256xi1>, vector<8x256xf32>
    %cst_29 = arith.constant 0.000000e+00 : f32
    %48 = vector.broadcast %cst_29 : f32 to vector<8x256xf32>
    %49 = arith.select %44, %48, %42 : vector<8x256xi1>, vector<8x256xf32>
    %c24 = arith.constant 24 : index
    %c0_30 = arith.constant 0 : index
    %50 = vector.load %arg9[%c24, %c0_30] : memref<128x256xf32, #tpu.memory_space<vmem>>, vector<8x256xf32>
    tpu.vector_store %arg9[%c24, %c0_30], %47 {strides = array<i32>} : memref<128x256xf32, #tpu.memory_space<vmem>>, vector<8x256xf32>,
    %51 = arith.addf %49, %5 : vector<8x256xf32>
    %cst_31 = arith.constant 5.000000e-01 : f32
    %52 = vector.broadcast %cst_31 : f32 to vector<8x256xf32>
    %53 = arith.mulf %52, %51 : vector<8x256xf32>
    %cst_32 = arith.constant 1.000000e+00 : f32
    %54 = vector.broadcast %cst_32 : f32 to vector<8x256xf32>
    %55 = arith.cmpf oge, %53, %54 : vector<8x256xf32>
    %cst_33 = arith.constant 1.000000e+00 : f32
    %cst_34 = arith.constant 0.000000e+00 : f32
    %56 = vector.broadcast %cst_33 : f32 to vector<8x256xf32>
    %57 = vector.broadcast %cst_34 : f32 to vector<8x256xf32>
    %58 = arith.select %55, %56, %57 : vector<8x256xi1>, vector<8x256xf32>
    %cst_35 = arith.constant 0.000000e+00 : f32
    %59 = vector.broadcast %cst_35 : f32 to vector<8x256xf32>
    %60 = arith.select %55, %59, %53 : vector<8x256xi1>, vector<8x256xf32>
    %c32 = arith.constant 32 : index
    %c0_36 = arith.constant 0 : index
    %61 = vector.load %arg9[%c32, %c0_36] : memref<128x256xf32, #tpu.memory_space<vmem>>, vector<8x256xf32>
    tpu.vector_store %arg9[%c32, %c0_36], %58 {strides = array<i32>} : memref<128x256xf32, #tpu.memory_space<vmem>>, vector<8x256xf32>,
    %62 = arith.addf %60, %5 : vector<8x256xf32>
    %cst_37 = arith.constant 5.000000e-01 : f32
    %63 = vector.broadcast %cst_37 : f32 to vector<8x256xf32>
    %64 = arith.mulf %63, %62 : vector<8x256xf32>
    %cst_38 = arith.constant 1.000000e+00 : f32
    %65 = vector.broadcast %cst_38 : f32 to vector<8x256xf32>
    %66 = arith.cmpf oge, %64, %65 : vector<8x256xf32>
    %cst_39 = arith.constant 1.000000e+00 : f32
    %cst_40 = arith.constant 0.000000e+00 : f32
    %67 = vector.broadcast %cst_39 : f32 to vector<8x256xf32>
    %68 = vector.broadcast %cst_40 : f32 to vector<8x256xf32>
    %69 = arith.select %66, %67, %68 : vector<8x256xi1>, vector<8x256xf32>
    %cst_41 = arith.constant 0.000000e+00 : f32
    %70 = vector.broadcast %cst_41 : f32 to vector<8x256xf32>
    %71 = arith.select %66, %70, %64 : vector<8x256xi1>, vector<8x256xf32>
    %c40 = arith.constant 40 : index
    %c0_42 = arith.constant 0 : index
    %72 = vector.load %arg9[%c40, %c0_42] : memref<128x256xf32, #tpu.memory_space<vmem>>, vector<8x256xf32>
    tpu.vector_store %arg9[%c40, %c0_42], %69 {strides = array<i32>} : memref<128x256xf32, #tpu.memory_space<vmem>>, vector<8x256xf32>,
    %73 = arith.addf %71, %5 : vector<8x256xf32>
    %cst_43 = arith.constant 5.000000e-01 : f32
    %74 = vector.broadcast %cst_43 : f32 to vector<8x256xf32>
    %75 = arith.mulf %74, %73 : vector<8x256xf32>
    %cst_44 = arith.constant 1.000000e+00 : f32
    %76 = vector.broadcast %cst_44 : f32 to vector<8x256xf32>
    %77 = arith.cmpf oge, %75, %76 : vector<8x256xf32>
    %cst_45 = arith.constant 1.000000e+00 : f32
    %cst_46 = arith.constant 0.000000e+00 : f32
    %78 = vector.broadcast %cst_45 : f32 to vector<8x256xf32>
    %79 = vector.broadcast %cst_46 : f32 to vector<8x256xf32>
    %80 = arith.select %77, %78, %79 : vector<8x256xi1>, vector<8x256xf32>
    %cst_47 = arith.constant 0.000000e+00 : f32
    %81 = vector.broadcast %cst_47 : f32 to vector<8x256xf32>
    %82 = arith.select %77, %81, %75 : vector<8x256xi1>, vector<8x256xf32>
    %c48 = arith.constant 48 : index
    %c0_48 = arith.constant 0 : index
    %83 = vector.load %arg9[%c48, %c0_48] : memref<128x256xf32, #tpu.memory_space<vmem>>, vector<8x256xf32>
    tpu.vector_store %arg9[%c48, %c0_48], %80 {strides = array<i32>} : memref<128x256xf32, #tpu.memory_space<vmem>>, vector<8x256xf32>,
    %84 = arith.addf %82, %5 : vector<8x256xf32>
    %cst_49 = arith.constant 5.000000e-01 : f32
    %85 = vector.broadcast %cst_49 : f32 to vector<8x256xf32>
    %86 = arith.mulf %85, %84 : vector<8x256xf32>
    %cst_50 = arith.constant 1.000000e+00 : f32
    %87 = vector.broadcast %cst_50 : f32 to vector<8x256xf32>
    %88 = arith.cmpf oge, %86, %87 : vector<8x256xf32>
    %cst_51 = arith.constant 1.000000e+00 : f32
    %cst_52 = arith.constant 0.000000e+00 : f32
    %89 = vector.broadcast %cst_51 : f32 to vector<8x256xf32>
    %90 = vector.broadcast %cst_52 : f32 to vector<8x256xf32>
    %91 = arith.select %88, %89, %90 : vector<8x256xi1>, vector<8x256xf32>
    %cst_53 = arith.constant 0.000000e+00 : f32
    %92 = vector.broadcast %cst_53 : f32 to vector<8x256xf32>
    %93 = arith.select %88, %92, %86 : vector<8x256xi1>, vector<8x256xf32>
    %c56 = arith.constant 56 : index
    %c0_54 = arith.constant 0 : index
    %94 = vector.load %arg9[%c56, %c0_54] : memref<128x256xf32, #tpu.memory_space<vmem>>, vector<8x256xf32>
    tpu.vector_store %arg9[%c56, %c0_54], %91 {strides = array<i32>} : memref<128x256xf32, #tpu.memory_space<vmem>>, vector<8x256xf32>,
    %95 = arith.addf %93, %5 : vector<8x256xf32>
    %cst_55 = arith.constant 5.000000e-01 : f32
    %96 = vector.broadcast %cst_55 : f32 to vector<8x256xf32>
    %97 = arith.mulf %96, %95 : vector<8x256xf32>
    %cst_56 = arith.constant 1.000000e+00 : f32
    %98 = vector.broadcast %cst_56 : f32 to vector<8x256xf32>
    %99 = arith.cmpf oge, %97, %98 : vector<8x256xf32>
    %cst_57 = arith.constant 1.000000e+00 : f32
    %cst_58 = arith.constant 0.000000e+00 : f32
    %100 = vector.broadcast %cst_57 : f32 to vector<8x256xf32>
    %101 = vector.broadcast %cst_58 : f32 to vector<8x256xf32>
    %102 = arith.select %99, %100, %101 : vector<8x256xi1>, vector<8x256xf32>
    %cst_59 = arith.constant 0.000000e+00 : f32
    %103 = vector.broadcast %cst_59 : f32 to vector<8x256xf32>
    %104 = arith.select %99, %103, %97 : vector<8x256xi1>, vector<8x256xf32>
    %c64 = arith.constant 64 : index
    %c0_60 = arith.constant 0 : index
    %105 = vector.load %arg9[%c64, %c0_60] : memref<128x256xf32, #tpu.memory_space<vmem>>, vector<8x256xf32>
    tpu.vector_store %arg9[%c64, %c0_60], %102 {strides = array<i32>} : memref<128x256xf32, #tpu.memory_space<vmem>>, vector<8x256xf32>,
    %106 = arith.addf %104, %5 : vector<8x256xf32>
    %cst_61 = arith.constant 5.000000e-01 : f32
    %107 = vector.broadcast %cst_61 : f32 to vector<8x256xf32>
    %108 = arith.mulf %107, %106 : vector<8x256xf32>
    %cst_62 = arith.constant 1.000000e+00 : f32
    %109 = vector.broadcast %cst_62 : f32 to vector<8x256xf32>
    %110 = arith.cmpf oge, %108, %109 : vector<8x256xf32>
    %cst_63 = arith.constant 1.000000e+00 : f32
    %cst_64 = arith.constant 0.000000e+00 : f32
    %111 = vector.broadcast %cst_63 : f32 to vector<8x256xf32>
    %112 = vector.broadcast %cst_64 : f32 to vector<8x256xf32>
    %113 = arith.select %110, %111, %112 : vector<8x256xi1>, vector<8x256xf32>
    %cst_65 = arith.constant 0.000000e+00 : f32
    %114 = vector.broadcast %cst_65 : f32 to vector<8x256xf32>
    %115 = arith.select %110, %114, %108 : vector<8x256xi1>, vector<8x256xf32>
    %c72 = arith.constant 72 : index
    %c0_66 = arith.constant 0 : index
    %116 = vector.load %arg9[%c72, %c0_66] : memref<128x256xf32, #tpu.memory_space<vmem>>, vector<8x256xf32>
    tpu.vector_store %arg9[%c72, %c0_66], %113 {strides = array<i32>} : memref<128x256xf32, #tpu.memory_space<vmem>>, vector<8x256xf32>,
    %117 = arith.addf %115, %5 : vector<8x256xf32>
    %cst_67 = arith.constant 5.000000e-01 : f32
    %118 = vector.broadcast %cst_67 : f32 to vector<8x256xf32>
    %119 = arith.mulf %118, %117 : vector<8x256xf32>
    %cst_68 = arith.constant 1.000000e+00 : f32
    %120 = vector.broadcast %cst_68 : f32 to vector<8x256xf32>
    %121 = arith.cmpf oge, %119, %120 : vector<8x256xf32>
    %cst_69 = arith.constant 1.000000e+00 : f32
    %cst_70 = arith.constant 0.000000e+00 : f32
    %122 = vector.broadcast %cst_69 : f32 to vector<8x256xf32>
    %123 = vector.broadcast %cst_70 : f32 to vector<8x256xf32>
    %124 = arith.select %121, %122, %123 : vector<8x256xi1>, vector<8x256xf32>
    %cst_71 = arith.constant 0.000000e+00 : f32
    %125 = vector.broadcast %cst_71 : f32 to vector<8x256xf32>
    %126 = arith.select %121, %125, %119 : vector<8x256xi1>, vector<8x256xf32>
    %c80 = arith.constant 80 : index
    %c0_72 = arith.constant 0 : index
    %127 = vector.load %arg9[%c80, %c0_72] : memref<128x256xf32, #tpu.memory_space<vmem>>, vector<8x256xf32>
    tpu.vector_store %arg9[%c80, %c0_72], %124 {strides = array<i32>} : memref<128x256xf32, #tpu.memory_space<vmem>>, vector<8x256xf32>,
    %128 = arith.addf %126, %5 : vector<8x256xf32>
    %cst_73 = arith.constant 5.000000e-01 : f32
    %129 = vector.broadcast %cst_73 : f32 to vector<8x256xf32>
    %130 = arith.mulf %129, %128 : vector<8x256xf32>
    %cst_74 = arith.constant 1.000000e+00 : f32
    %131 = vector.broadcast %cst_74 : f32 to vector<8x256xf32>
    %132 = arith.cmpf oge, %130, %131 : vector<8x256xf32>
    %cst_75 = arith.constant 1.000000e+00 : f32
    %cst_76 = arith.constant 0.000000e+00 : f32
    %133 = vector.broadcast %cst_75 : f32 to vector<8x256xf32>
    %134 = vector.broadcast %cst_76 : f32 to vector<8x256xf32>
    %135 = arith.select %132, %133, %134 : vector<8x256xi1>, vector<8x256xf32>
    %cst_77 = arith.constant 0.000000e+00 : f32
    %136 = vector.broadcast %cst_77 : f32 to vector<8x256xf32>
    %137 = arith.select %132, %136, %130 : vector<8x256xi1>, vector<8x256xf32>
    %c88 = arith.constant 88 : index
    %c0_78 = arith.constant 0 : index
    %138 = vector.load %arg9[%c88, %c0_78] : memref<128x256xf32, #tpu.memory_space<vmem>>, vector<8x256xf32>
    tpu.vector_store %arg9[%c88, %c0_78], %135 {strides = array<i32>} : memref<128x256xf32, #tpu.memory_space<vmem>>, vector<8x256xf32>,
    %139 = arith.addf %137, %5 : vector<8x256xf32>
    %cst_79 = arith.constant 5.000000e-01 : f32
    %140 = vector.broadcast %cst_79 : f32 to vector<8x256xf32>
    %141 = arith.mulf %140, %139 : vector<8x256xf32>
    %cst_80 = arith.constant 1.000000e+00 : f32
    %142 = vector.broadcast %cst_80 : f32 to vector<8x256xf32>
    %143 = arith.cmpf oge, %141, %142 : vector<8x256xf32>
    %cst_81 = arith.constant 1.000000e+00 : f32
    %cst_82 = arith.constant 0.000000e+00 : f32
    %144 = vector.broadcast %cst_81 : f32 to vector<8x256xf32>
    %145 = vector.broadcast %cst_82 : f32 to vector<8x256xf32>
    %146 = arith.select %143, %144, %145 : vector<8x256xi1>, vector<8x256xf32>
    %cst_83 = arith.constant 0.000000e+00 : f32
    %147 = vector.broadcast %cst_83 : f32 to vector<8x256xf32>
    %148 = arith.select %143, %147, %141 : vector<8x256xi1>, vector<8x256xf32>
    %c96 = arith.constant 96 : index
    %c0_84 = arith.constant 0 : index
    %149 = vector.load %arg9[%c96, %c0_84] : memref<128x256xf32, #tpu.memory_space<vmem>>, vector<8x256xf32>
    tpu.vector_store %arg9[%c96, %c0_84], %146 {strides = array<i32>} : memref<128x256xf32, #tpu.memory_space<vmem>>, vector<8x256xf32>,
    %150 = arith.addf %148, %5 : vector<8x256xf32>
    %cst_85 = arith.constant 5.000000e-01 : f32
    %151 = vector.broadcast %cst_85 : f32 to vector<8x256xf32>
    %152 = arith.mulf %151, %150 : vector<8x256xf32>
    %cst_86 = arith.constant 1.000000e+00 : f32
    %153 = vector.broadcast %cst_86 : f32 to vector<8x256xf32>
    %154 = arith.cmpf oge, %152, %153 : vector<8x256xf32>
    %cst_87 = arith.constant 1.000000e+00 : f32
    %cst_88 = arith.constant 0.000000e+00 : f32
    %155 = vector.broadcast %cst_87 : f32 to vector<8x256xf32>
    %156 = vector.broadcast %cst_88 : f32 to vector<8x256xf32>
    %157 = arith.select %154, %155, %156 : vector<8x256xi1>, vector<8x256xf32>
    %cst_89 = arith.constant 0.000000e+00 : f32
    %158 = vector.broadcast %cst_89 : f32 to vector<8x256xf32>
    %159 = arith.select %154, %158, %152 : vector<8x256xi1>, vector<8x256xf32>
    %c104 = arith.constant 104 : index
    %c0_90 = arith.constant 0 : index
    %160 = vector.load %arg9[%c104, %c0_90] : memref<128x256xf32, #tpu.memory_space<vmem>>, vector<8x256xf32>
    tpu.vector_store %arg9[%c104, %c0_90], %157 {strides = array<i32>} : memref<128x256xf32, #tpu.memory_space<vmem>>, vector<8x256xf32>,
    %161 = arith.addf %159, %5 : vector<8x256xf32>
    %cst_91 = arith.constant 5.000000e-01 : f32
    %162 = vector.broadcast %cst_91 : f32 to vector<8x256xf32>
    %163 = arith.mulf %162, %161 : vector<8x256xf32>
    %cst_92 = arith.constant 1.000000e+00 : f32
    %164 = vector.broadcast %cst_92 : f32 to vector<8x256xf32>
    %165 = arith.cmpf oge, %163, %164 : vector<8x256xf32>
    %cst_93 = arith.constant 1.000000e+00 : f32
    %cst_94 = arith.constant 0.000000e+00 : f32
    %166 = vector.broadcast %cst_93 : f32 to vector<8x256xf32>
    %167 = vector.broadcast %cst_94 : f32 to vector<8x256xf32>
    %168 = arith.select %165, %166, %167 : vector<8x256xi1>, vector<8x256xf32>
    %cst_95 = arith.constant 0.000000e+00 : f32
    %169 = vector.broadcast %cst_95 : f32 to vector<8x256xf32>
    %170 = arith.select %165, %169, %163 : vector<8x256xi1>, vector<8x256xf32>
    %c112 = arith.constant 112 : index
    %c0_96 = arith.constant 0 : index
    %171 = vector.load %arg9[%c112, %c0_96] : memref<128x256xf32, #tpu.memory_space<vmem>>, vector<8x256xf32>
    tpu.vector_store %arg9[%c112, %c0_96], %168 {strides = array<i32>} : memref<128x256xf32, #tpu.memory_space<vmem>>, vector<8x256xf32>,
    %172 = arith.addf %170, %5 : vector<8x256xf32>
    %cst_97 = arith.constant 5.000000e-01 : f32
    %173 = vector.broadcast %cst_97 : f32 to vector<8x256xf32>
    %174 = arith.mulf %173, %172 : vector<8x256xf32>
    %cst_98 = arith.constant 1.000000e+00 : f32
    %175 = vector.broadcast %cst_98 : f32 to vector<8x256xf32>
    %176 = arith.cmpf oge, %174, %175 : vector<8x256xf32>
    %cst_99 = arith.constant 1.000000e+00 : f32
    %cst_100 = arith.constant 0.000000e+00 : f32
    %177 = vector.broadcast %cst_99 : f32 to vector<8x256xf32>
    %178 = vector.broadcast %cst_100 : f32 to vector<8x256xf32>
    %179 = arith.select %176, %177, %178 : vector<8x256xi1>, vector<8x256xf32>
    %c120 = arith.constant 120 : index
    %c0_101 = arith.constant 0 : index
    %180 = vector.load %arg9[%c120, %c0_101] : memref<128x256xf32, #tpu.memory_space<vmem>>, vector<8x256xf32>
    tpu.vector_store %arg9[%c120, %c0_101], %179 {strides = array<i32>} : memref<128x256xf32, #tpu.memory_space<vmem>>, vector<8x256xf32>,
    %c0_102 = arith.constant 0 : index
    %c0_103 = arith.constant 0 : index
    %181 = vector.load %arg9[%c0_102, %c0_103] : memref<128x256xf32, #tpu.memory_space<vmem>>, vector<128x256xf32>
    %c0_104 = arith.constant 0 : index
    %c0_105 = arith.constant 0 : index
    %182 = vector.load %arg4[%c0_104, %c0_105] : memref<256x256xf32, #tpu.memory_space<vmem>>, vector<256x256xf32>
    %cst_106 = arith.constant dense<0.000000e+00> : vector<128x256xf32>
    %183 = tpu.matmul %181, %182, %cst_106 {dimension_numbers = #tpu.dot_dimension_numbers<[1], [0], [0], [1], [0, 0, 1, 1], [], []>} : vector<128x256xf32>, vector<256x256xf32>, vector<128x256xf32> -> vector<128x256xf32>
    %c0_107 = arith.constant 0 : index
    %c0_108 = arith.constant 0 : index
    %184 = vector.load %arg5[%c0_107, %c0_108] : memref<1x256xf32, #tpu.memory_space<vmem>>, vector<1x256xf32>
    %185 = vector.broadcast %184 : vector<1x256xf32> to vector<128x256xf32>
    %186 = arith.addf %183, %185 : vector<128x256xf32>
    %cst_109 = arith.constant 0.000000e+00 : f32
    %187 = vector.broadcast %cst_109 : f32 to vector<8x256xf32>
    %cst_110 = arith.constant 0.000000e+00 : f32
    %188 = vector.broadcast %cst_110 : f32 to vector<8x256xf32>
    %189 = vector.extract_strided_slice %186 {offsets = [0, 0], sizes = [8, 256], strides = [1, 1]} : vector<128x256xf32> to vector<8x256xf32>
    %190 = arith.addf %187, %189 : vector<8x256xf32>
    %cst_111 = arith.constant 5.000000e-01 : f32
    %191 = vector.broadcast %cst_111 : f32 to vector<8x256xf32>
    %192 = arith.mulf %191, %190 : vector<8x256xf32>
    %cst_112 = arith.constant 1.000000e+00 : f32
    %193 = vector.broadcast %cst_112 : f32 to vector<8x256xf32>
    %194 = arith.cmpf oge, %192, %193 : vector<8x256xf32>
    %cst_113 = arith.constant 1.000000e+00 : f32
    %cst_114 = arith.constant 0.000000e+00 : f32
    %195 = vector.broadcast %cst_113 : f32 to vector<8x256xf32>
    %196 = vector.broadcast %cst_114 : f32 to vector<8x256xf32>
    %197 = arith.select %194, %195, %196 : vector<8x256xi1>, vector<8x256xf32>
    %cst_115 = arith.constant 0.000000e+00 : f32
    %198 = vector.broadcast %cst_115 : f32 to vector<8x256xf32>
    %199 = arith.select %194, %198, %192 : vector<8x256xi1>, vector<8x256xf32>
    %200 = arith.addf %188, %197 : vector<8x256xf32>
    %cst_116 = arith.constant 5.000000e-01 : f32
    %201 = vector.broadcast %cst_116 : f32 to vector<8x256xf32>
    %202 = arith.mulf %201, %200 : vector<8x256xf32>
    %203 = vector.extract_strided_slice %186 {offsets = [8, 0], sizes = [8, 256], strides = [1, 1]} : vector<128x256xf32> to vector<8x256xf32>
    %204 = arith.addf %199, %203 : vector<8x256xf32>
    %cst_117 = arith.constant 5.000000e-01 : f32
    %205 = vector.broadcast %cst_117 : f32 to vector<8x256xf32>
    %206 = arith.mulf %205, %204 : vector<8x256xf32>
    %cst_118 = arith.constant 1.000000e+00 : f32
    %207 = vector.broadcast %cst_118 : f32 to vector<8x256xf32>
    %208 = arith.cmpf oge, %206, %207 : vector<8x256xf32>
    %cst_119 = arith.constant 1.000000e+00 : f32
    %cst_120 = arith.constant 0.000000e+00 : f32
    %209 = vector.broadcast %cst_119 : f32 to vector<8x256xf32>
    %210 = vector.broadcast %cst_120 : f32 to vector<8x256xf32>
    %211 = arith.select %208, %209, %210 : vector<8x256xi1>, vector<8x256xf32>
    %cst_121 = arith.constant 0.000000e+00 : f32
    %212 = vector.broadcast %cst_121 : f32 to vector<8x256xf32>
    %213 = arith.select %208, %212, %206 : vector<8x256xi1>, vector<8x256xf32>
    %214 = arith.addf %202, %211 : vector<8x256xf32>
    %cst_122 = arith.constant 5.000000e-01 : f32
    %215 = vector.broadcast %cst_122 : f32 to vector<8x256xf32>
    %216 = arith.mulf %215, %214 : vector<8x256xf32>
    %217 = vector.extract_strided_slice %186 {offsets = [16, 0], sizes = [8, 256], strides = [1, 1]} : vector<128x256xf32> to vector<8x256xf32>
    %218 = arith.addf %213, %217 : vector<8x256xf32>
    %cst_123 = arith.constant 5.000000e-01 : f32
    %219 = vector.broadcast %cst_123 : f32 to vector<8x256xf32>
    %220 = arith.mulf %219, %218 : vector<8x256xf32>
    %cst_124 = arith.constant 1.000000e+00 : f32
    %221 = vector.broadcast %cst_124 : f32 to vector<8x256xf32>
    %222 = arith.cmpf oge, %220, %221 : vector<8x256xf32>
    %cst_125 = arith.constant 1.000000e+00 : f32
    %cst_126 = arith.constant 0.000000e+00 : f32
    %223 = vector.broadcast %cst_125 : f32 to vector<8x256xf32>
    %224 = vector.broadcast %cst_126 : f32 to vector<8x256xf32>
    %225 = arith.select %222, %223, %224 : vector<8x256xi1>, vector<8x256xf32>
    %cst_127 = arith.constant 0.000000e+00 : f32
    %226 = vector.broadcast %cst_127 : f32 to vector<8x256xf32>
    %227 = arith.select %222, %226, %220 : vector<8x256xi1>, vector<8x256xf32>
    %228 = arith.addf %216, %225 : vector<8x256xf32>
    %cst_128 = arith.constant 5.000000e-01 : f32
    %229 = vector.broadcast %cst_128 : f32 to vector<8x256xf32>
    %230 = arith.mulf %229, %228 : vector<8x256xf32>
    %231 = vector.extract_strided_slice %186 {offsets = [24, 0], sizes = [8, 256], strides = [1, 1]} : vector<128x256xf32> to vector<8x256xf32>
    %232 = arith.addf %227, %231 : vector<8x256xf32>
    %cst_129 = arith.constant 5.000000e-01 : f32
    %233 = vector.broadcast %cst_129 : f32 to vector<8x256xf32>
    %234 = arith.mulf %233, %232 : vector<8x256xf32>
    %cst_130 = arith.constant 1.000000e+00 : f32
    %235 = vector.broadcast %cst_130 : f32 to vector<8x256xf32>
    %236 = arith.cmpf oge, %234, %235 : vector<8x256xf32>
    %cst_131 = arith.constant 1.000000e+00 : f32
    %cst_132 = arith.constant 0.000000e+00 : f32
    %237 = vector.broadcast %cst_131 : f32 to vector<8x256xf32>
    %238 = vector.broadcast %cst_132 : f32 to vector<8x256xf32>
    %239 = arith.select %236, %237, %238 : vector<8x256xi1>, vector<8x256xf32>
    %cst_133 = arith.constant 0.000000e+00 : f32
    %240 = vector.broadcast %cst_133 : f32 to vector<8x256xf32>
    %241 = arith.select %236, %240, %234 : vector<8x256xi1>, vector<8x256xf32>
    %242 = arith.addf %230, %239 : vector<8x256xf32>
    %cst_134 = arith.constant 5.000000e-01 : f32
    %243 = vector.broadcast %cst_134 : f32 to vector<8x256xf32>
    %244 = arith.mulf %243, %242 : vector<8x256xf32>
    %245 = vector.extract_strided_slice %186 {offsets = [32, 0], sizes = [8, 256], strides = [1, 1]} : vector<128x256xf32> to vector<8x256xf32>
    %246 = arith.addf %241, %245 : vector<8x256xf32>
    %cst_135 = arith.constant 5.000000e-01 : f32
    %247 = vector.broadcast %cst_135 : f32 to vector<8x256xf32>
    %248 = arith.mulf %247, %246 : vector<8x256xf32>
    %cst_136 = arith.constant 1.000000e+00 : f32
    %249 = vector.broadcast %cst_136 : f32 to vector<8x256xf32>
    %250 = arith.cmpf oge, %248, %249 : vector<8x256xf32>
    %cst_137 = arith.constant 1.000000e+00 : f32
    %cst_138 = arith.constant 0.000000e+00 : f32
    %251 = vector.broadcast %cst_137 : f32 to vector<8x256xf32>
    %252 = vector.broadcast %cst_138 : f32 to vector<8x256xf32>
    %253 = arith.select %250, %251, %252 : vector<8x256xi1>, vector<8x256xf32>
    %cst_139 = arith.constant 0.000000e+00 : f32
    %254 = vector.broadcast %cst_139 : f32 to vector<8x256xf32>
    %255 = arith.select %250, %254, %248 : vector<8x256xi1>, vector<8x256xf32>
    %256 = arith.addf %244, %253 : vector<8x256xf32>
    %cst_140 = arith.constant 5.000000e-01 : f32
    %257 = vector.broadcast %cst_140 : f32 to vector<8x256xf32>
    %258 = arith.mulf %257, %256 : vector<8x256xf32>
    %259 = vector.extract_strided_slice %186 {offsets = [40, 0], sizes = [8, 256], strides = [1, 1]} : vector<128x256xf32> to vector<8x256xf32>
    %260 = arith.addf %255, %259 : vector<8x256xf32>
    %cst_141 = arith.constant 5.000000e-01 : f32
    %261 = vector.broadcast %cst_141 : f32 to vector<8x256xf32>
    %262 = arith.mulf %261, %260 : vector<8x256xf32>
    %cst_142 = arith.constant 1.000000e+00 : f32
    %263 = vector.broadcast %cst_142 : f32 to vector<8x256xf32>
    %264 = arith.cmpf oge, %262, %263 : vector<8x256xf32>
    %cst_143 = arith.constant 1.000000e+00 : f32
    %cst_144 = arith.constant 0.000000e+00 : f32
    %265 = vector.broadcast %cst_143 : f32 to vector<8x256xf32>
    %266 = vector.broadcast %cst_144 : f32 to vector<8x256xf32>
    %267 = arith.select %264, %265, %266 : vector<8x256xi1>, vector<8x256xf32>
    %cst_145 = arith.constant 0.000000e+00 : f32
    %268 = vector.broadcast %cst_145 : f32 to vector<8x256xf32>
    %269 = arith.select %264, %268, %262 : vector<8x256xi1>, vector<8x256xf32>
    %270 = arith.addf %258, %267 : vector<8x256xf32>
    %cst_146 = arith.constant 5.000000e-01 : f32
    %271 = vector.broadcast %cst_146 : f32 to vector<8x256xf32>
    %272 = arith.mulf %271, %270 : vector<8x256xf32>
    %273 = vector.extract_strided_slice %186 {offsets = [48, 0], sizes = [8, 256], strides = [1, 1]} : vector<128x256xf32> to vector<8x256xf32>
    %274 = arith.addf %269, %273 : vector<8x256xf32>
    %cst_147 = arith.constant 5.000000e-01 : f32
    %275 = vector.broadcast %cst_147 : f32 to vector<8x256xf32>
    %276 = arith.mulf %275, %274 : vector<8x256xf32>
    %cst_148 = arith.constant 1.000000e+00 : f32
    %277 = vector.broadcast %cst_148 : f32 to vector<8x256xf32>
    %278 = arith.cmpf oge, %276, %277 : vector<8x256xf32>
    %cst_149 = arith.constant 1.000000e+00 : f32
    %cst_150 = arith.constant 0.000000e+00 : f32
    %279 = vector.broadcast %cst_149 : f32 to vector<8x256xf32>
    %280 = vector.broadcast %cst_150 : f32 to vector<8x256xf32>
    %281 = arith.select %278, %279, %280 : vector<8x256xi1>, vector<8x256xf32>
    %cst_151 = arith.constant 0.000000e+00 : f32
    %282 = vector.broadcast %cst_151 : f32 to vector<8x256xf32>
    %283 = arith.select %278, %282, %276 : vector<8x256xi1>, vector<8x256xf32>
    %284 = arith.addf %272, %281 : vector<8x256xf32>
    %cst_152 = arith.constant 5.000000e-01 : f32
    %285 = vector.broadcast %cst_152 : f32 to vector<8x256xf32>
    %286 = arith.mulf %285, %284 : vector<8x256xf32>
    %287 = vector.extract_strided_slice %186 {offsets = [56, 0], sizes = [8, 256], strides = [1, 1]} : vector<128x256xf32> to vector<8x256xf32>
    %288 = arith.addf %283, %287 : vector<8x256xf32>
    %cst_153 = arith.constant 5.000000e-01 : f32
    %289 = vector.broadcast %cst_153 : f32 to vector<8x256xf32>
    %290 = arith.mulf %289, %288 : vector<8x256xf32>
    %cst_154 = arith.constant 1.000000e+00 : f32
    %291 = vector.broadcast %cst_154 : f32 to vector<8x256xf32>
    %292 = arith.cmpf oge, %290, %291 : vector<8x256xf32>
    %cst_155 = arith.constant 1.000000e+00 : f32
    %cst_156 = arith.constant 0.000000e+00 : f32
    %293 = vector.broadcast %cst_155 : f32 to vector<8x256xf32>
    %294 = vector.broadcast %cst_156 : f32 to vector<8x256xf32>
    %295 = arith.select %292, %293, %294 : vector<8x256xi1>, vector<8x256xf32>
    %cst_157 = arith.constant 0.000000e+00 : f32
    %296 = vector.broadcast %cst_157 : f32 to vector<8x256xf32>
    %297 = arith.select %292, %296, %290 : vector<8x256xi1>, vector<8x256xf32>
    %298 = arith.addf %286, %295 : vector<8x256xf32>
    %cst_158 = arith.constant 5.000000e-01 : f32
    %299 = vector.broadcast %cst_158 : f32 to vector<8x256xf32>
    %300 = arith.mulf %299, %298 : vector<8x256xf32>
    %301 = vector.extract_strided_slice %186 {offsets = [64, 0], sizes = [8, 256], strides = [1, 1]} : vector<128x256xf32> to vector<8x256xf32>
    %302 = arith.addf %297, %301 : vector<8x256xf32>
    %cst_159 = arith.constant 5.000000e-01 : f32
    %303 = vector.broadcast %cst_159 : f32 to vector<8x256xf32>
    %304 = arith.mulf %303, %302 : vector<8x256xf32>
    %cst_160 = arith.constant 1.000000e+00 : f32
    %305 = vector.broadcast %cst_160 : f32 to vector<8x256xf32>
    %306 = arith.cmpf oge, %304, %305 : vector<8x256xf32>
    %cst_161 = arith.constant 1.000000e+00 : f32
    %cst_162 = arith.constant 0.000000e+00 : f32
    %307 = vector.broadcast %cst_161 : f32 to vector<8x256xf32>
    %308 = vector.broadcast %cst_162 : f32 to vector<8x256xf32>
    %309 = arith.select %306, %307, %308 : vector<8x256xi1>, vector<8x256xf32>
    %cst_163 = arith.constant 0.000000e+00 : f32
    %310 = vector.broadcast %cst_163 : f32 to vector<8x256xf32>
    %311 = arith.select %306, %310, %304 : vector<8x256xi1>, vector<8x256xf32>
    %312 = arith.addf %300, %309 : vector<8x256xf32>
    %cst_164 = arith.constant 5.000000e-01 : f32
    %313 = vector.broadcast %cst_164 : f32 to vector<8x256xf32>
    %314 = arith.mulf %313, %312 : vector<8x256xf32>
    %315 = vector.extract_strided_slice %186 {offsets = [72, 0], sizes = [8, 256], strides = [1, 1]} : vector<128x256xf32> to vector<8x256xf32>
    %316 = arith.addf %311, %315 : vector<8x256xf32>
    %cst_165 = arith.constant 5.000000e-01 : f32
    %317 = vector.broadcast %cst_165 : f32 to vector<8x256xf32>
    %318 = arith.mulf %317, %316 : vector<8x256xf32>
    %cst_166 = arith.constant 1.000000e+00 : f32
    %319 = vector.broadcast %cst_166 : f32 to vector<8x256xf32>
    %320 = arith.cmpf oge, %318, %319 : vector<8x256xf32>
    %cst_167 = arith.constant 1.000000e+00 : f32
    %cst_168 = arith.constant 0.000000e+00 : f32
    %321 = vector.broadcast %cst_167 : f32 to vector<8x256xf32>
    %322 = vector.broadcast %cst_168 : f32 to vector<8x256xf32>
    %323 = arith.select %320, %321, %322 : vector<8x256xi1>, vector<8x256xf32>
    %cst_169 = arith.constant 0.000000e+00 : f32
    %324 = vector.broadcast %cst_169 : f32 to vector<8x256xf32>
    %325 = arith.select %320, %324, %318 : vector<8x256xi1>, vector<8x256xf32>
    %326 = arith.addf %314, %323 : vector<8x256xf32>
    %cst_170 = arith.constant 5.000000e-01 : f32
    %327 = vector.broadcast %cst_170 : f32 to vector<8x256xf32>
    %328 = arith.mulf %327, %326 : vector<8x256xf32>
    %329 = vector.extract_strided_slice %186 {offsets = [80, 0], sizes = [8, 256], strides = [1, 1]} : vector<128x256xf32> to vector<8x256xf32>
    %330 = arith.addf %325, %329 : vector<8x256xf32>
    %cst_171 = arith.constant 5.000000e-01 : f32
    %331 = vector.broadcast %cst_171 : f32 to vector<8x256xf32>
    %332 = arith.mulf %331, %330 : vector<8x256xf32>
    %cst_172 = arith.constant 1.000000e+00 : f32
    %333 = vector.broadcast %cst_172 : f32 to vector<8x256xf32>
    %334 = arith.cmpf oge, %332, %333 : vector<8x256xf32>
    %cst_173 = arith.constant 1.000000e+00 : f32
    %cst_174 = arith.constant 0.000000e+00 : f32
    %335 = vector.broadcast %cst_173 : f32 to vector<8x256xf32>
    %336 = vector.broadcast %cst_174 : f32 to vector<8x256xf32>
    %337 = arith.select %334, %335, %336 : vector<8x256xi1>, vector<8x256xf32>
    %cst_175 = arith.constant 0.000000e+00 : f32
    %338 = vector.broadcast %cst_175 : f32 to vector<8x256xf32>
    %339 = arith.select %334, %338, %332 : vector<8x256xi1>, vector<8x256xf32>
    %340 = arith.addf %328, %337 : vector<8x256xf32>
    %cst_176 = arith.constant 5.000000e-01 : f32
    %341 = vector.broadcast %cst_176 : f32 to vector<8x256xf32>
    %342 = arith.mulf %341, %340 : vector<8x256xf32>
    %343 = vector.extract_strided_slice %186 {offsets = [88, 0], sizes = [8, 256], strides = [1, 1]} : vector<128x256xf32> to vector<8x256xf32>
    %344 = arith.addf %339, %343 : vector<8x256xf32>
    %cst_177 = arith.constant 5.000000e-01 : f32
    %345 = vector.broadcast %cst_177 : f32 to vector<8x256xf32>
    %346 = arith.mulf %345, %344 : vector<8x256xf32>
    %cst_178 = arith.constant 1.000000e+00 : f32
    %347 = vector.broadcast %cst_178 : f32 to vector<8x256xf32>
    %348 = arith.cmpf oge, %346, %347 : vector<8x256xf32>
    %cst_179 = arith.constant 1.000000e+00 : f32
    %cst_180 = arith.constant 0.000000e+00 : f32
    %349 = vector.broadcast %cst_179 : f32 to vector<8x256xf32>
    %350 = vector.broadcast %cst_180 : f32 to vector<8x256xf32>
    %351 = arith.select %348, %349, %350 : vector<8x256xi1>, vector<8x256xf32>
    %cst_181 = arith.constant 0.000000e+00 : f32
    %352 = vector.broadcast %cst_181 : f32 to vector<8x256xf32>
    %353 = arith.select %348, %352, %346 : vector<8x256xi1>, vector<8x256xf32>
    %354 = arith.addf %342, %351 : vector<8x256xf32>
    %cst_182 = arith.constant 5.000000e-01 : f32
    %355 = vector.broadcast %cst_182 : f32 to vector<8x256xf32>
    %356 = arith.mulf %355, %354 : vector<8x256xf32>
    %357 = vector.extract_strided_slice %186 {offsets = [96, 0], sizes = [8, 256], strides = [1, 1]} : vector<128x256xf32> to vector<8x256xf32>
    %358 = arith.addf %353, %357 : vector<8x256xf32>
    %cst_183 = arith.constant 5.000000e-01 : f32
    %359 = vector.broadcast %cst_183 : f32 to vector<8x256xf32>
    %360 = arith.mulf %359, %358 : vector<8x256xf32>
    %cst_184 = arith.constant 1.000000e+00 : f32
    %361 = vector.broadcast %cst_184 : f32 to vector<8x256xf32>
    %362 = arith.cmpf oge, %360, %361 : vector<8x256xf32>
    %cst_185 = arith.constant 1.000000e+00 : f32
    %cst_186 = arith.constant 0.000000e+00 : f32
    %363 = vector.broadcast %cst_185 : f32 to vector<8x256xf32>
    %364 = vector.broadcast %cst_186 : f32 to vector<8x256xf32>
    %365 = arith.select %362, %363, %364 : vector<8x256xi1>, vector<8x256xf32>
    %cst_187 = arith.constant 0.000000e+00 : f32
    %366 = vector.broadcast %cst_187 : f32 to vector<8x256xf32>
    %367 = arith.select %362, %366, %360 : vector<8x256xi1>, vector<8x256xf32>
    %368 = arith.addf %356, %365 : vector<8x256xf32>
    %cst_188 = arith.constant 5.000000e-01 : f32
    %369 = vector.broadcast %cst_188 : f32 to vector<8x256xf32>
    %370 = arith.mulf %369, %368 : vector<8x256xf32>
    %371 = vector.extract_strided_slice %186 {offsets = [104, 0], sizes = [8, 256], strides = [1, 1]} : vector<128x256xf32> to vector<8x256xf32>
    %372 = arith.addf %367, %371 : vector<8x256xf32>
    %cst_189 = arith.constant 5.000000e-01 : f32
    %373 = vector.broadcast %cst_189 : f32 to vector<8x256xf32>
    %374 = arith.mulf %373, %372 : vector<8x256xf32>
    %cst_190 = arith.constant 1.000000e+00 : f32
    %375 = vector.broadcast %cst_190 : f32 to vector<8x256xf32>
    %376 = arith.cmpf oge, %374, %375 : vector<8x256xf32>
    %cst_191 = arith.constant 1.000000e+00 : f32
    %cst_192 = arith.constant 0.000000e+00 : f32
    %377 = vector.broadcast %cst_191 : f32 to vector<8x256xf32>
    %378 = vector.broadcast %cst_192 : f32 to vector<8x256xf32>
    %379 = arith.select %376, %377, %378 : vector<8x256xi1>, vector<8x256xf32>
    %cst_193 = arith.constant 0.000000e+00 : f32
    %380 = vector.broadcast %cst_193 : f32 to vector<8x256xf32>
    %381 = arith.select %376, %380, %374 : vector<8x256xi1>, vector<8x256xf32>
    %382 = arith.addf %370, %379 : vector<8x256xf32>
    %cst_194 = arith.constant 5.000000e-01 : f32
    %383 = vector.broadcast %cst_194 : f32 to vector<8x256xf32>
    %384 = arith.mulf %383, %382 : vector<8x256xf32>
    %385 = vector.extract_strided_slice %186 {offsets = [112, 0], sizes = [8, 256], strides = [1, 1]} : vector<128x256xf32> to vector<8x256xf32>
    %386 = arith.addf %381, %385 : vector<8x256xf32>
    %cst_195 = arith.constant 5.000000e-01 : f32
    %387 = vector.broadcast %cst_195 : f32 to vector<8x256xf32>
    %388 = arith.mulf %387, %386 : vector<8x256xf32>
    %cst_196 = arith.constant 1.000000e+00 : f32
    %389 = vector.broadcast %cst_196 : f32 to vector<8x256xf32>
    %390 = arith.cmpf oge, %388, %389 : vector<8x256xf32>
    %cst_197 = arith.constant 1.000000e+00 : f32
    %cst_198 = arith.constant 0.000000e+00 : f32
    %391 = vector.broadcast %cst_197 : f32 to vector<8x256xf32>
    %392 = vector.broadcast %cst_198 : f32 to vector<8x256xf32>
    %393 = arith.select %390, %391, %392 : vector<8x256xi1>, vector<8x256xf32>
    %cst_199 = arith.constant 0.000000e+00 : f32
    %394 = vector.broadcast %cst_199 : f32 to vector<8x256xf32>
    %395 = arith.select %390, %394, %388 : vector<8x256xi1>, vector<8x256xf32>
    %396 = arith.addf %384, %393 : vector<8x256xf32>
    %cst_200 = arith.constant 5.000000e-01 : f32
    %397 = vector.broadcast %cst_200 : f32 to vector<8x256xf32>
    %398 = arith.mulf %397, %396 : vector<8x256xf32>
    %399 = vector.extract_strided_slice %186 {offsets = [120, 0], sizes = [8, 256], strides = [1, 1]} : vector<128x256xf32> to vector<8x256xf32>
    %400 = arith.addf %395, %399 : vector<8x256xf32>
    %cst_201 = arith.constant 5.000000e-01 : f32
    %401 = vector.broadcast %cst_201 : f32 to vector<8x256xf32>
    %402 = arith.mulf %401, %400 : vector<8x256xf32>
    %cst_202 = arith.constant 1.000000e+00 : f32
    %403 = vector.broadcast %cst_202 : f32 to vector<8x256xf32>
    %404 = arith.cmpf oge, %402, %403 : vector<8x256xf32>
    %cst_203 = arith.constant 1.000000e+00 : f32
    %cst_204 = arith.constant 0.000000e+00 : f32
    %405 = vector.broadcast %cst_203 : f32 to vector<8x256xf32>
    %406 = vector.broadcast %cst_204 : f32 to vector<8x256xf32>
    %407 = arith.select %404, %405, %406 : vector<8x256xi1>, vector<8x256xf32>
    %408 = arith.addf %398, %407 : vector<8x256xf32>
    %cst_205 = arith.constant 5.000000e-01 : f32
    %409 = vector.broadcast %cst_205 : f32 to vector<8x256xf32>
    %410 = arith.mulf %409, %408 : vector<8x256xf32>
    %c0_206 = arith.constant 0 : index
    %c0_207 = arith.constant 0 : index
    %411 = vector.load %arg6[%c0_206, %c0_207] : memref<256x128xf32, #tpu.memory_space<vmem>>, vector<256x128xf32>
    %cst_208 = arith.constant dense<0.000000e+00> : vector<8x128xf32>
    %412 = tpu.matmul %410, %411, %cst_208 {dimension_numbers = #tpu.dot_dimension_numbers<[1], [0], [0], [1], [0, 0, 1, 1], [], []>} : vector<8x256xf32>, vector<256x128xf32>, vector<8x128xf32> -> vector<8x128xf32>
    %c0_209 = arith.constant 0 : index
    %c0_210 = arith.constant 0 : index
    %413 = vector.load %arg7[%c0_209, %c0_210] : memref<1x128xf32, #tpu.memory_space<vmem>>, vector<1x128xf32>
    %cst_211 = arith.constant 0.999984741 : f32
    %414 = vector.broadcast %cst_211 : f32 to vector<1x128xf32>
    %415 = arith.mulf %414, %413 : vector<1x128xf32>
    %416 = vector.broadcast %415 : vector<1x128xf32> to vector<8x128xf32>
    %417 = arith.addf %412, %416 : vector<8x128xf32>
    %418 = math.tanh %417 : vector<8x128xf32>
    %cst_212 = arith.constant 1.000000e+00 : f32
    %419 = vector.broadcast %cst_212 : f32 to vector<8x128xf32>
    %420 = arith.mulf %419, %418 : vector<8x128xf32>
    %c0_213 = arith.constant 0 : index
    %c0_214 = arith.constant 0 : index
    %421 = vector.load %arg8[%c0_213, %c0_214] : memref<8x128xf32, #tpu.memory_space<vmem>>, vector<8x128xf32>
    tpu.vector_store %arg8[%c0_213, %c0_214], %420 {strides = array<i32>} : memref<8x128xf32, #tpu.memory_space<vmem>>, vector<8x128xf32>,
    return
  }
  func.func @transform_0(%arg0: i32) -> (i32, i32) {
    %c0_i32 = arith.constant 0 : i32
    %c0_i32_0 = arith.constant 0 : i32
    %c0_i32_1 = arith.constant 0 : i32
    return %c0_i32, %c0_i32_0 : i32, i32
  }
  func.func @transform_1(%arg0: i32) -> (i32, i32) {
    %c0_i32 = arith.constant 0 : i32
    %c0_i32_0 = arith.constant 0 : i32
    %c0_i32_1 = arith.constant 0 : i32
    return %c0_i32, %c0_i32_0 : i32, i32
  }
  func.func @transform_2(%arg0: i32) -> (i32, i32) {
    %c0_i32 = arith.constant 0 : i32
    %c0_i32_0 = arith.constant 0 : i32
    %c0_i32_1 = arith.constant 0 : i32
    return %c0_i32, %c0_i32_0 : i32, i32
  }
  func.func @transform_3(%arg0: i32) -> (i32, i32) {
    %c0_i32 = arith.constant 0 : i32
    %c0_i32_0 = arith.constant 0 : i32
    %c0_i32_1 = arith.constant 0 : i32
    return %c0_i32, %c0_i32_0 : i32, i32
  }
  func.func @transform_4(%arg0: i32) -> (i32, i32) {
    %c0_i32 = arith.constant 0 : i32
    %c0_i32_0 = arith.constant 0 : i32
    %c0_i32_1 = arith.constant 0 : i32
    return %c0_i32, %c0_i32_0 : i32, i32
  }
  func.func @transform_5(%arg0: i32) -> (i32, i32) {
    %c0_i32 = arith.constant 0 : i32
    %c0_i32_0 = arith.constant 0 : i32
    %c0_i32_1 = arith.constant 0 : i32
    return %c0_i32, %c0_i32_0 : i32, i32
  }
  func.func @transform_6(%arg0: i32) -> (i32, i32) {
    %c0_i32 = arith.constant 0 : i32
    %c0_i32_0 = arith.constant 0 : i32
    %c0_i32_1 = arith.constant 0 : i32
    return %c0_i32, %c0_i32_0 : i32, i32
  }
  func.func @transform_7(%arg0: i32) -> (i32, i32) {
    %c0_i32 = arith.constant 0 : i32
    %c0_i32_0 = arith.constant 0 : i32
    %c0_i32_1 = arith.constant 0 : i32
    return %c0_i32, %c0_i32_0 : i32, i32
  }
}

</mosaic_0001>

<llo_original>
// kernel: tpu_custom_call.1
$region0: #{tpu_custom_call.1}
  #allocation0 [shape = 'u32[]', space=smem, size = 0x4, offset = 0x4, fixed_abs, tag = 'smem constant byte address 0x4 - core index']
  #allocation1 [shape = 'u32[144,128]{1,0:T(1,128)}', space=vmem, size = 0x12000, scoped, tag = 'internal scratch']
  #allocation2 [shape = 'f32[128,256]{1,0:T(8,128)}', space=vmem, size = 0x20000, scoped, tag = 'scratch operand']
  %s0 = inlined_call_operand.hbm [shape: f32[8,16], index: 0, kind: input, shape index: {}]
  %s1 = inlined_call_operand.hbm [shape: f32[16,256], index: 1, kind: input, shape index: {}]
  %s2 = inlined_call_operand.vmem [shape: f32[1,256], index: 2, kind: input, shape index: {}]
  %s3 = inlined_call_operand.hbm [shape: f32[256,256], index: 3, kind: input, shape index: {}]
  %s4 = inlined_call_operand.vmem [shape: f32[1,256], index: 4, kind: input, shape index: {}]
  %s5 = inlined_call_operand.hbm [shape: f32[256,128], index: 5, kind: input, shape index: {}]
  %s6 = inlined_call_operand.vmem [shape: f32[1,128], index: 6, kind: input, shape index: {}]
  %s7 = inlined_call_operand.hbm [shape: f32[8,128], index: 7, kind: output, shape index: {}]
  %s8 = sld [smem:[#allocation0]]
  $region54: #{tpu_custom_call.1} parent=0
    _
  %s10 = ssub.s32 1, %s8
  %s11 = scalar_select 0, %s10, %s8
  $region1: #{tpu_custom_call.1} parent=0
    #allocation3 [shape = 'u8[4096]{0}', space=vmem, size = 0x1000, scoped, tag = 'input window, operand 0, single buffered']
    #allocation4 [shape = 's32[1]{0}', space=sflag, size = 0x4, scoped, tag = 'scoped memory for tpu_custom_call.1']
    #allocation5 [shape = 's32[1]{0}', space=sflag, size = 0x4, scoped, tag = 'scoped memory for tpu_custom_call.1']
    #allocation6 [shape = 'u8[16384]{0}', space=vmem, size = 0x4000, scoped, tag = 'input window, operand 1, single buffered']
    #allocation7 [shape = 's32[1]{0}', space=sflag, size = 0x4, scoped, tag = 'scoped memory for tpu_custom_call.1']
    #allocation8 [shape = 'u8[262144]{0}', space=vmem, size = 0x40000, scoped, tag = 'input window, operand 3, single buffered']
    #allocation9 [shape = 'u8[131072]{0}', space=vmem, size = 0x20000, scoped, tag = 'input window, operand 5, single buffered']
    #allocation10 [shape = 's32[1]{0}', space=sflag, size = 0x4, scoped, tag = 'scoped memory for tpu_custom_call.1']
    #allocation11 [shape = 'u8[4096]{0}', space=vmem, size = 0x1000, scoped, tag = 'output window, operand 0, single buffered']
    %12 = vsyncpa [#allocation4], 0
    %13 = vsyncpa [#allocation7], 0
    %14 = vsyncpa [#allocation10], 0
    %15 = vsyncpa [#allocation5], 0
    // Predicated region
    $region2: #{tpu_custom_call.1} parent=1 // pred_check
      _
    $region3: #{tpu_custom_call.1} parent=1 // pred_check_branch
      %17 = sbr.rel (0) target = $region5
    $region4: #{tpu_custom_call.1} parent=1 // pred_region
      %s19 = ssub.s32 128, 128
      %20 = vsyncadd [#allocation4], %s19
      %s22 = sshll.u32 [#allocation3], 4
      %s23 = int_to_ptr.vmem [resolvable:$true] %s22
      %25 = dma.hbm_to_vmem [thread:$0]  %s0, 128, %s23, [#allocation4]
    $region5: #{tpu_custom_call.1} parent=1 // pred_fallthru
      _
    // Predicated region
    $region6: #{tpu_custom_call.1} parent=1 // pred_check
      _
    $region7: #{tpu_custom_call.1} parent=1 // pred_check_branch
      %27 = sbr.rel (0) target = $region9
    $region8: #{tpu_custom_call.1} parent=1 // pred_region
      %s29 = ssub.s32 512, 512
      %30 = vsyncadd [#allocation7], %s29
      %s31 = sshll.u32 [#allocation6], 4
      %s32 = int_to_ptr.vmem [resolvable:$true] %s31
      %37 = dma.hbm_to_vmem [thread:$0]  %s1, 512, %s32, [#allocation7], 256, 256, 16
    $region9: #{tpu_custom_call.1} parent=1 // pred_fallthru
      _
    // Predicated region
    $region10: #{tpu_custom_call.1} parent=1 // pred_check
      _
    $region11: #{tpu_custom_call.1} parent=1 // pred_check_branch
      %39 = sbr.rel (0) target = $region13
    $region12: #{tpu_custom_call.1} parent=1 // pred_region
      _
    $region13: #{tpu_custom_call.1} parent=1 // pred_fallthru
      _
    // Predicated region
    $region14: #{tpu_custom_call.1} parent=1 // pred_check
      _
    $region15: #{tpu_custom_call.1} parent=1 // pred_check_branch
      %41 = sbr.rel (0) target = $region17
    $region16: #{tpu_custom_call.1} parent=1 // pred_region
      %s43 = ssub.s32 8192, 8192
      %44 = vsyncadd [#allocation7], %s43
      %s45 = sshll.u32 [#allocation8], 4
      %s46 = int_to_ptr.vmem [resolvable:$true] %s45
      %51 = dma.hbm_to_vmem [thread:$0]  %s3, 8192, %s46, [#allocation7], 256, 256, 16
    $region17: #{tpu_custom_call.1} parent=1 // pred_fallthru
      _
    // Predicated region
    $region18: #{tpu_custom_call.1} parent=1 // pred_check
      _
    $region19: #{tpu_custom_call.1} parent=1 // pred_check_branch
      %53 = sbr.rel (0) target = $region21
    $region20: #{tpu_custom_call.1} parent=1 // pred_region
      _
    $region21: #{tpu_custom_call.1} parent=1 // pred_fallthru
      _
    // Predicated region
    $region22: #{tpu_custom_call.1} parent=1 // pred_check
      _
    $region23: #{tpu_custom_call.1} parent=1 // pred_check_branch
      %55 = sbr.rel (0) target = $region25
    $region24: #{tpu_custom_call.1} parent=1 // pred_region
      %s57 = ssub.s32 4096, 4096
      %58 = vsyncadd [#allocation10], %s57
      %s59 = sshll.u32 [#allocation9], 4
      %s60 = int_to_ptr.vmem [resolvable:$true] %s59
      %65 = dma.hbm_to_vmem [thread:$0]  %s5, 4096, %s60, [#allocation10], 128, 128, 8
    $region25: #{tpu_custom_call.1} parent=1 // pred_fallthru
      _
    // Predicated region
    $region26: #{tpu_custom_call.1} parent=1 // pred_check
      _
    $region27: #{tpu_custom_call.1} parent=1 // pred_check_branch
      %67 = sbr.rel (0) target = $region29
    $region28: #{tpu_custom_call.1} parent=1 // pred_region
      _
    $region29: #{tpu_custom_call.1} parent=1 // pred_fallthru
      _
    // Predicated region
    $region30: #{tpu_custom_call.1} parent=1 // pred_check
      _
    $region31: #{tpu_custom_call.1} parent=1 // pred_check_branch
      %69 = sbr.rel (0) target = $region33
    $region32: #{tpu_custom_call.1} parent=1 // pred_region
      %70 = dma.done [#allocation4], 128
    $region33: #{tpu_custom_call.1} parent=1 // pred_fallthru
      _
    // Predicated region
    $region34: #{tpu_custom_call.1} parent=1 // pred_check
      _
    $region35: #{tpu_custom_call.1} parent=1 // pred_check_branch
      %72 = sbr.rel (0) target = $region37
    $region36: #{tpu_custom_call.1} parent=1 // pred_region
      %73 = dma.done [#allocation7], 512
    $region37: #{tpu_custom_call.1} parent=1 // pred_fallthru
      _
    // Predicated region
    $region38: #{tpu_custom_call.1} parent=1 // pred_check
      _
    $region39: #{tpu_custom_call.1} parent=1 // pred_check_branch
      %75 = sbr.rel (0) target = $region41
    $region40: #{tpu_custom_call.1} parent=1 // pred_region
      %76 = dma.done [#allocation7], 8192
    $region41: #{tpu_custom_call.1} parent=1 // pred_fallthru
      _
    // Predicated region
    $region42: #{tpu_custom_call.1} parent=1 // pred_check
      _
    $region43: #{tpu_custom_call.1} parent=1 // pred_check_branch
      %78 = sbr.rel (0) target = $region45
    $region44: #{tpu_custom_call.1} parent=1 // pred_region
      %79 = dma.done [#allocation10], 4096
    $region45: #{tpu_custom_call.1} parent=1 // pred_fallthru
      _
    %v80 = vld [vmem:[#allocation3] sm:$0xff]
    %v81 = vld [vmem:[#allocation6] sm:$0xff]
    %v82 = vld [vmem:[#allocation6 + $0x8] sm:$0xff]
    %v83 = vld [vmem:[#allocation6 + $0x10] sm:$0xff]
    %v84 = vld [vmem:[#allocation6 + $0x18] sm:$0xff]
    %v85 = vld [vmem:[%s2] sm:$0x3]
    %v87 = vlaneseq
    %v88 = vshrl.u32 %v87, 7
    %v89 = vsub.s32 0, %v88
    %v90 = vrot.slane %v85, %v89
    %v91 = vlaneseq
    %v92 = vshrl.u32 %v91, 7
    %v93 = vsub.s32 1, %v92
    %v94 = vrot.slane %v85, %v93
    %vm97 = vcmask 130048
    %v99 = vsel %vm97, %v80, 0
    %101 = vmatprep.subr.mxu0 0.0
    %102 = vmatpush1.msra.mxu0 0.0
    %103 = vmatprep.subr.mxu0 0.0
    %104 = vmatpush1.msra.mxu0 0.0
    %105 = vmatprep.subr.mxu0 0.0
    %106 = vmatpush1.msra.mxu0 0.0
    %107 = vmatprep.subr.mxu0 0.0
    %108 = vmatpush1.msra.mxu0 0.0
    %109 = vmatprep.subr.mxu0 0.0
    %110 = vmatpush1.msra.mxu0 0.0
    %111 = vmatprep.subr.mxu0 0.0
    %112 = vmatpush1.msra.mxu0 0.0
    %113 = vmatprep.subr.mxu0 0.0
    %114 = vmatpush1.msra.mxu0 0.0
    %115 = vmatprep.subr.mxu0 0.0
    %116 = vmatpush1.msra.mxu0 0.0
    %117 = vmatprep.subr.mxu0 0.0
    %118 = vmatpush1.msra.mxu0 0.0
    %119 = vmatprep.subr.mxu0 0.0
    %120 = vmatpush1.msra.mxu0 0.0
    %121 = vmatprep.subr.mxu0 0.0
    %122 = vmatpush1.msra.mxu0 0.0
    %123 = vmatprep.subr.mxu0 0.0
    %124 = vmatpush1.msra.mxu0 0.0
    %125 = vmatprep.subr.mxu0 0.0
    %126 = vmatpush1.msra.mxu0 0.0
    %127 = vmatprep.subr.mxu0 0.0
    %128 = vmatpush1.msra.mxu0 0.0
    %129 = vmatprep.subr.mxu0 %v84
    %130 = vmatpush1.msra.mxu0 %v83
    %131 = vmatprep.subr.mxu0 %v82
    %132 = vmatpush1.msra.mxu0 %v81
    %133 = vmatprep.subr.mxu0 0.0
    %134 = vmatpush2.msra.mxu0 0.0
    %135 = vmatprep.subr.mxu0 0.0
    %136 = vmatpush2.msra.mxu0 0.0
    %137 = vmatprep.subr.mxu0 0.0
    %138 = vmatpush2.msra.mxu0 0.0
    %139 = vmatprep.subr.mxu0 0.0
    %140 = vmatpush2.msra.mxu0 0.0
    %141 = vmatprep.subr.mxu0 0.0
    %142 = vmatpush2.msra.mxu0 0.0
    %143 = vmatprep.subr.mxu0 0.0
    %144 = vmatpush2.msra.mxu0 0.0
    %145 = vmatprep.subr.mxu0 0.0
    %146 = vmatpush2.msra.mxu0 0.0
    %147 = vmatprep.subr.mxu0 0.0
    %148 = vmatpush2.msra.mxu0 0.0
    %149 = vmatprep.subr.mxu0 0.0
    %150 = vmatpush2.msra.mxu0 0.0
    %151 = vmatprep.subr.mxu0 0.0
    %152 = vmatpush2.msra.mxu0 0.0
    %153 = vmatprep.subr.mxu0 0.0
    %154 = vmatpush2.msra.mxu0 0.0
    %155 = vmatprep.subr.mxu0 0.0
    %156 = vmatpush2.msra.mxu0 0.0
    %157 = vmatprep.subr.mxu0 0.0
    %158 = vmatpush2.msra.mxu0 0.0
    %159 = vmatprep.subr.mxu0 0.0
    %160 = vmatpush2.msra.mxu0 0.0
    %161 = vmatprep.subr.mxu0 0.0
    %162 = vmatpush2.msra.mxu0 0.0
    %163 = vmatprep.subr.mxu0 0.0
    %164 = vmatpush2.msra.mxu0 0.0
    %165 = vmatprep.mubr.f32.mxu0 0.0
    %166 = vmatmul.mubr.f32.gmra.mxu0 %v99
    %v167 = vpop.f32.mrf.mxu0
    %v168 = vadd.f32 %v90, %v167
    %v169 = vpop.f32.mrf.mxu0
    %v170 = vadd.f32 %v94, %v169
    %171 = vdwg.mxu0
    %v172 = vadd.f32 %v168, 0.0
    %v173 = vadd.f32 %v170, 0.0
    %v174 = vmul.f32 %v172, 0.5
    %v175 = vmul.f32 %v173, 0.5
    %vm176 = vcmp.ge.f32.partialorder %v174, 1.0
    %vm177 = vcmp.ge.f32.partialorder %v175, 1.0
    %v178 = vsel %vm176, 1.0, 0.0
    %v179 = vsel %vm177, 1.0, 0.0
    %v180 = vsel %vm176, 0.0, %v174
    %v181 = vsel %vm177, 0.0, %v175
    %182 = vst [vmem:[#allocation2] sm:$0xff] %v178
    %183 = vst [vmem:[#allocation2 + $0x8] sm:$0xff] %v179
    %v184 = vadd.f32 %v180, %v168
    %v185 = vadd.f32 %v181, %v170
    %v186 = vmul.f32 %v184, 0.5
    %v187 = vmul.f32 %v185, 0.5
    %vm188 = vcmp.ge.f32.partialorder %v186, 1.0
    %vm189 = vcmp.ge.f32.partialorder %v187, 1.0
    %v190 = vsel %vm188, 1.0, 0.0
    %v191 = vsel %vm189, 1.0, 0.0
    %v192 = vsel %vm188, 0.0, %v186
    %v193 = vsel %vm189, 0.0, %v187
    %194 = vst [vmem:[#allocation2 + $0x10] sm:$0xff] %v190
    %195 = vst [vmem:[#allocation2 + $0x18] sm:$0xff] %v191
    %v196 = vadd.f32 %v192, %v168
    %v197 = vadd.f32 %v193, %v170
    %v198 = vmul.f32 %v196, 0.5
    %v199 = vmul.f32 %v197, 0.5
    %vm200 = vcmp.ge.f32.partialorder %v198, 1.0
    %vm201 = vcmp.ge.f32.partialorder %v199, 1.0
    %v202 = vsel %vm200, 1.0, 0.0
    %v203 = vsel %vm201, 1.0, 0.0
    %v204 = vsel %vm200, 0.0, %v198
    %v205 = vsel %vm201, 0.0, %v199
    %206 = vst [vmem:[#allocation2 + $0x20] sm:$0xff] %v202
    %207 = vst [vmem:[#allocation2 + $0x28] sm:$0xff] %v203
    %v208 = vadd.f32 %v204, %v168
    %v209 = vadd.f32 %v205, %v170
    %v210 = vmul.f32 %v208, 0.5
    %v211 = vmul.f32 %v209, 0.5
    %vm212 = vcmp.ge.f32.partialorder %v210, 1.0
    %vm213 = vcmp.ge.f32.partialorder %v211, 1.0
    %v214 = vsel %vm212, 1.0, 0.0
    %v215 = vsel %vm213, 1.0, 0.0
    %v216 = vsel %vm212, 0.0, %v210
    %v217 = vsel %vm213, 0.0, %v211
    %218 = vst [vmem:[#allocation2 + $0x30] sm:$0xff] %v214
    %219 = vst [vmem:[#allocation2 + $0x38] sm:$0xff] %v215
    %v220 = vadd.f32 %v216, %v168
    %v221 = vadd.f32 %v217, %v170
    %v222 = vmul.f32 %v220, 0.5
    %v223 = vmul.f32 %v221, 0.5
    %vm224 = vcmp.ge.f32.partialorder %v222, 1.0
    %vm225 = vcmp.ge.f32.partialorder %v223, 1.0
    %v226 = vsel %vm224, 1.0, 0.0
    %v227 = vsel %vm225, 1.0, 0.0
    %v228 = vsel %vm224, 0.0, %v222
    %v229 = vsel %vm225, 0.0, %v223
    %230 = vst [vmem:[#allocation2 + $0x40] sm:$0xff] %v226
    %231 = vst [vmem:[#allocation2 + $0x48] sm:$0xff] %v227
    %v232 = vadd.f32 %v228, %v168
    %v233 = vadd.f32 %v229, %v170
    %v234 = vmul.f32 %v232, 0.5
    %v235 = vmul.f32 %v233, 0.5
    %vm236 = vcmp.ge.f32.partialorder %v234, 1.0
    %vm237 = vcmp.ge.f32.partialorder %v235, 1.0
    %v238 = vsel %vm236, 1.0, 0.0
    %v239 = vsel %vm237, 1.0, 0.0
    %v240 = vsel %vm236, 0.0, %v234
    %v241 = vsel %vm237, 0.0, %v235
    %242 = vst [vmem:[#allocation2 + $0x50] sm:$0xff] %v238
    %243 = vst [vmem:[#allocation2 + $0x58] sm:$0xff] %v239
    %v244 = vadd.f32 %v240, %v168
    %v245 = vadd.f32 %v241, %v170
    %v246 = vmul.f32 %v244, 0.5
    %v247 = vmul.f32 %v245, 0.5
    %vm248 = vcmp.ge.f32.partialorder %v246, 1.0
    %vm249 = vcmp.ge.f32.partialorder %v247, 1.0
    %v250 = vsel %vm248, 1.0, 0.0
    %v251 = vsel %vm249, 1.0, 0.0
    %v252 = vsel %vm248, 0.0, %v246
    %v253 = vsel %vm249, 0.0, %v247
    %254 = vst [vmem:[#allocation2 + $0x60] sm:$0xff] %v250
    %255 = vst [vmem:[#allocation2 + $0x68] sm:$0xff] %v251
    %v256 = vadd.f32 %v252, %v168
    %v257 = vadd.f32 %v253, %v170
    %v258 = vmul.f32 %v256, 0.5
    %v259 = vmul.f32 %v257, 0.5
    %vm260 = vcmp.ge.f32.partialorder %v258, 1.0
    %vm261 = vcmp.ge.f32.partialorder %v259, 1.0
    %v262 = vsel %vm260, 1.0, 0.0
    %v263 = vsel %vm261, 1.0, 0.0
    %v264 = vsel %vm260, 0.0, %v258
    %v265 = vsel %vm261, 0.0, %v259
    %266 = vst [vmem:[#allocation2 + $0x70] sm:$0xff] %v262
    %267 = vst [vmem:[#allocation2 + $0x78] sm:$0xff] %v263
    %v268 = vadd.f32 %v264, %v168
    %v269 = vadd.f32 %v265, %v170
    %v270 = vmul.f32 %v268, 0.5
    %v271 = vmul.f32 %v269, 0.5
    %vm272 = vcmp.ge.f32.partialorder %v270, 1.0
    %vm273 = vcmp.ge.f32.partialorder %v271, 1.0
    %v274 = vsel %vm272, 1.0, 0.0
    %v275 = vsel %vm273, 1.0, 0.0
    %v276 = vsel %vm272, 0.0, %v270
    %v277 = vsel %vm273, 0.0, %v271
    %278 = vst [vmem:[#allocation2 + $0x80] sm:$0xff] %v274
    %279 = vst [vmem:[#allocation2 + $0x88] sm:$0xff] %v275
    %v280 = vadd.f32 %v276, %v168
    %v281 = vadd.f32 %v277, %v170
    %v282 = vmul.f32 %v280, 0.5
    %v283 = vmul.f32 %v281, 0.5
    %vm284 = vcmp.ge.f32.partialorder %v282, 1.0
    %vm285 = vcmp.ge.f32.partialorder %v283, 1.0
    %v286 = vsel %vm284, 1.0, 0.0
    %v287 = vsel %vm285, 1.0, 0.0
    %v288 = vsel %vm284, 0.0, %v282
    %v289 = vsel %vm285, 0.0, %v283
    %290 = vst [vmem:[#allocation2 + $0x90] sm:$0xff] %v286
    %291 = vst [vmem:[#allocation2 + $0x98] sm:$0xff] %v287
    %v292 = vadd.f32 %v288, %v168
    %v293 = vadd.f32 %v289, %v170
    %v294 = vmul.f32 %v292, 0.5
    %v295 = vmul.f32 %v293, 0.5
    %vm296 = vcmp.ge.f32.partialorder %v294, 1.0
    %vm297 = vcmp.ge.f32.partialorder %v295, 1.0
    %v298 = vsel %vm296, 1.0, 0.0
    %v299 = vsel %vm297, 1.0, 0.0
    %v300 = vsel %vm296, 0.0, %v294
    %v301 = vsel %vm297, 0.0, %v295
    %302 = vst [vmem:[#allocation2 + $0xa0] sm:$0xff] %v298
    %303 = vst [vmem:[#allocation2 + $0xa8] sm:$0xff] %v299
    %v304 = vadd.f32 %v300, %v168
    %v305 = vadd.f32 %v301, %v170
    %v306 = vmul.f32 %v304, 0.5
    %v307 = vmul.f32 %v305, 0.5
    %vm308 = vcmp.ge.f32.partialorder %v306, 1.0
    %vm309 = vcmp.ge.f32.partialorder %v307, 1.0
    %v310 = vsel %vm308, 1.0, 0.0
    %v311 = vsel %vm309, 1.0, 0.0
    %v312 = vsel %vm308, 0.0, %v306
    %v313 = vsel %vm309, 0.0, %v307
    %314 = vst [vmem:[#allocation2 + $0xb0] sm:$0xff] %v310
    %315 = vst [vmem:[#allocation2 + $0xb8] sm:$0xff] %v311
    %v316 = vadd.f32 %v312, %v168
    %v317 = vadd.f32 %v313, %v170
    %v318 = vmul.f32 %v316, 0.5
    %v319 = vmul.f32 %v317, 0.5
    %vm320 = vcmp.ge.f32.partialorder %v318, 1.0
    %vm321 = vcmp.ge.f32.partialorder %v319, 1.0
    %v322 = vsel %vm320, 1.0, 0.0
    %v323 = vsel %vm321, 1.0, 0.0
    %v324 = vsel %vm320, 0.0, %v318
    %v325 = vsel %vm321, 0.0, %v319
    %326 = vst [vmem:[#allocation2 + $0xc0] sm:$0xff] %v322
    %327 = vst [vmem:[#allocation2 + $0xc8] sm:$0xff] %v323
    %v328 = vadd.f32 %v324, %v168
    %v329 = vadd.f32 %v325, %v170
    %v330 = vmul.f32 %v328, 0.5
    %v331 = vmul.f32 %v329, 0.5
    %vm332 = vcmp.ge.f32.partialorder %v330, 1.0
    %vm333 = vcmp.ge.f32.partialorder %v331, 1.0
    %v334 = vsel %vm332, 1.0, 0.0
    %v335 = vsel %vm333, 1.0, 0.0
    %v336 = vsel %vm332, 0.0, %v330
    %v337 = vsel %vm333, 0.0, %v331
    %338 = vst [vmem:[#allocation2 + $0xd0] sm:$0xff] %v334
    %339 = vst [vmem:[#allocation2 + $0xd8] sm:$0xff] %v335
    %v340 = vadd.f32 %v336, %v168
    %v341 = vadd.f32 %v337, %v170
    %v342 = vmul.f32 %v340, 0.5
    %v343 = vmul.f32 %v341, 0.5
    %vm344 = vcmp.ge.f32.partialorder %v342, 1.0
    %vm345 = vcmp.ge.f32.partialorder %v343, 1.0
    %v346 = vsel %vm344, 1.0, 0.0
    %v347 = vsel %vm345, 1.0, 0.0
    %v348 = vsel %vm344, 0.0, %v342
    %v349 = vsel %vm345, 0.0, %v343
    %350 = vst [vmem:[#allocation2 + $0xe0] sm:$0xff] %v346
    %351 = vst [vmem:[#allocation2 + $0xe8] sm:$0xff] %v347
    %v352 = vadd.f32 %v348, %v168
    %v353 = vadd.f32 %v349, %v170
    %v354 = vmul.f32 %v352, 0.5
    %v355 = vmul.f32 %v353, 0.5
    %vm356 = vcmp.ge.f32.partialorder %v354, 1.0
    %vm357 = vcmp.ge.f32.partialorder %v355, 1.0
    %v358 = vsel %vm356, 1.0, 0.0
    %v359 = vsel %vm357, 1.0, 0.0
    %360 = vst [vmem:[#allocation2 + $0xf0] sm:$0xff] %v358
    %361 = vst [vmem:[#allocation2 + $0xf8] sm:$0xff] %v359
    %v362 = vld [vmem:[#allocation2] sm:$0xff]
    %v363 = vld [vmem:[#allocation2 + $0x8] sm:$0xff]
    %v364 = vld [vmem:[#allocation2 + $0x10] sm:$0xff]
    %v365 = vld [vmem:[#allocation2 + $0x18] sm:$0xff]
    %v366 = vld [vmem:[#allocation2 + $0x20] sm:$0xff]
    %v367 = vld [vmem:[#allocation2 + $0x28] sm:$0xff]
    %v368 = vld [vmem:[#allocation2 + $0x30] sm:$0xff]
    %v369 = vld [vmem:[#allocation2 + $0x38] sm:$0xff]
    %v370 = vld [vmem:[#allocation2 + $0x40] sm:$0xff]
    %v371 = vld [vmem:[#allocation2 + $0x48] sm:$0xff]
    %v372 = vld [vmem:[#allocation2 + $0x50] sm:$0xff]
    %v373 = vld [vmem:[#allocation2 + $0x58] sm:$0xff]
    %v374 = vld [vmem:[#allocation2 + $0x60] sm:$0xff]
    %v375 = vld [vmem:[#allocation2 + $0x68] sm:$0xff]
    %v376 = vld [vmem:[#allocation2 + $0x70] sm:$0xff]
    %v377 = vld [vmem:[#allocation2 + $0x78] sm:$0xff]
    %v378 = vld [vmem:[#allocation2 + $0x80] sm:$0xff]
    %v379 = vld [vmem:[#allocation2 + $0x88] sm:$0xff]
    %v380 = vld [vmem:[#allocation2 + $0x90] sm:$0xff]
    %v381 = vld [vmem:[#allocation2 + $0x98] sm:$0xff]
    %v382 = vld [vmem:[#allocation2 + $0xa0] sm:$0xff]
    %v383 = vld [vmem:[#allocation2 + $0xa8] sm:$0xff]
    %v384 = vld [vmem:[#allocation2 + $0xb0] sm:$0xff]
    %v385 = vld [vmem:[#allocation2 + $0xb8] sm:$0xff]
    %v386 = vld [vmem:[#allocation2 + $0xc0] sm:$0xff]
    %v387 = vld [vmem:[#allocation2 + $0xc8] sm:$0xff]
    %v388 = vld [vmem:[#allocation2 + $0xd0] sm:$0xff]
    %v389 = vld [vmem:[#allocation2 + $0xd8] sm:$0xff]
    %v390 = vld [vmem:[#allocation2 + $0xe0] sm:$0xff]
    %v391 = vld [vmem:[#allocation2 + $0xe8] sm:$0xff]
    %v392 = vld [vmem:[#allocation2 + $0xf0] sm:$0xff]
    %v393 = vld [vmem:[#allocation2 + $0xf8] sm:$0xff]
    %v394 = vld [vmem:[#allocation8] sm:$0xff]
    %v395 = vld [vmem:[#allocation8 + $0x8] sm:$0xff]
    %v396 = vld [vmem:[#allocation8 + $0x10] sm:$0xff]
    %v397 = vld [vmem:[#allocation8 + $0x18] sm:$0xff]
    %v398 = vld [vmem:[#allocation8 + $0x20] sm:$0xff]
    %v399 = vld [vmem:[#allocation8 + $0x28] sm:$0xff]
    %v400 = vld [vmem:[#allocation8 + $0x30] sm:$0xff]
    %v401 = vld [vmem:[#allocation8 + $0x38] sm:$0xff]
    %v402 = vld [vmem:[#allocation8 + $0x40] sm:$0xff]
    %v403 = vld [vmem:[#allocation8 + $0x48] sm:$0xff]
    %v404 = vld [vmem:[#allocation8 + $0x50] sm:$0xff]
    %v405 = vld [vmem:[#allocation8 + $0x58] sm:$0xff]
    %v406 = vld [vmem:[#allocation8 + $0x60] sm:$0xff]
    %v407 = vld [vmem:[#allocation8 + $0x68] sm:$0xff]
    %v408 = vld [vmem:[#allocation8 + $0x70] sm:$0xff]
    %v409 = vld [vmem:[#allocation8 + $0x78] sm:$0xff]
    %v410 = vld [vmem:[#allocation8 + $0x80] sm:$0xff]
    %v411 = vld [vmem:[#allocation8 + $0x88] sm:$0xff]
    %v412 = vld [vmem:[#allocation8 + $0x90] sm:$0xff]
    %v413 = vld [vmem:[#allocation8 + $0x98] sm:$0xff]
    %v414 = vld [vmem:[#allocation8 + $0xa0] sm:$0xff]
    %v415 = vld [vmem:[#allocation8 + $0xa8] sm:$0xff]
    %v416 = vld [vmem:[#allocation8 + $0xb0] sm:$0xff]
    %v417 = vld [vmem:[#allocation8 + $0xb8] sm:$0xff]
    %v418 = vld [vmem:[#allocation8 + $0xc0] sm:$0xff]
    %v419 = vld [vmem:[#allocation8 + $0xc8] sm:$0xff]
    %v420 = vld [vmem:[#allocation8 + $0xd0] sm:$0xff]
    %v421 = vld [vmem:[#allocation8 + $0xd8] sm:$0xff]
    %v422 = vld [vmem:[#allocation8 + $0xe0] sm:$0xff]
    %v423 = vld [vmem:[#allocation8 + $0xe8] sm:$0xff]
    %v424 = vld [vmem:[#allocation8 + $0xf0] sm:$0xff]
    %v425 = vld [vmem:[#allocation8 + $0xf8] sm:$0xff]
    %v426 = vld [vmem:[#allocation8 + $0x100] sm:$0xff]
    %v427 = vld [vmem:[#allocation8 + $0x108] sm:$0xff]
    %v428 = vld [vmem:[#allocation8 + $0x110] sm:$0xff]
    %v429 = vld [vmem:[#allocation8 + $0x118] sm:$0xff]
    %v430 = vld [vmem:[#allocation8 + $0x120] sm:$0xff]
    %v431 = vld [vmem:[#allocation8 + $0x128] sm:$0xff]
    %v432 = vld [vmem:[#allocation8 + $0x130] sm:$0xff]
    %v433 = vld [vmem:[#allocation8 + $0x138] sm:$0xff]
    %v434 = vld [vmem:[#allocation8 + $0x140] sm:$0xff]
    %v435 = vld [vmem:[#allocation8 + $0x148] sm:$0xff]
    %v436 = vld [vmem:[#allocation8 + $0x150] sm:$0xff]
    %v437 = vld [vmem:[#allocation8 + $0x158] sm:$0xff]
    %v438 = vld [vmem:[#allocation8 + $0x160] sm:$0xff]
    %v439 = vld [vmem:[#allocation8 + $0x168] sm:$0xff]
    %v440 = vld [vmem:[#allocation8 + $0x170] sm:$0xff]
    %v441 = vld [vmem:[#allocation8 + $0x178] sm:$0xff]
    %v442 = vld [vmem:[#allocation8 + $0x180] sm:$0xff]
    %v443 = vld [vmem:[#allocation8 + $0x188] sm:$0xff]
    %v444 = vld [vmem:[#allocation8 + $0x190] sm:$0xff]
    %v445 = vld [vmem:[#allocation8 + $0x198] sm:$0xff]
    %v446 = vld [vmem:[#allocation8 + $0x1a0] sm:$0xff]
    %v447 = vld [vmem:[#allocation8 + $0x1a8] sm:$0xff]
    %v448 = vld [vmem:[#allocation8 + $0x1b0] sm:$0xff]
    %v449 = vld [vmem:[#allocation8 + $0x1b8] sm:$0xff]
    %v450 = vld [vmem:[#allocation8 + $0x1c0] sm:$0xff]
    %v451 = vld [vmem:[#allocation8 + $0x1c8] sm:$0xff]
    %v452 = vld [vmem:[#allocation8 + $0x1d0] sm:$0xff]
    %v453 = vld [vmem:[#allocation8 + $0x1d8] sm:$0xff]
    %v454 = vld [vmem:[#allocation8 + $0x1e0] sm:$0xff]
    %v455 = vld [vmem:[#allocation8 + $0x1e8] sm:$0xff]
    %v456 = vld [vmem:[#allocation8 + $0x1f0] sm:$0xff]
    %v457 = vld [vmem:[#allocation8 + $0x1f8] sm:$0xff]
    %v458 = vld [vmem:[%s4] sm:$0x3]
    %v460 = vlaneseq
    %v461 = vshrl.u32 %v460, 7
    %v462 = vsub.s32 0, %v461
    %v463 = vrot.slane %v458, %v462
    %v464 = vlaneseq
    %v465 = vshrl.u32 %v464, 7
    %v466 = vsub.s32 1, %v465
    %v467 = vrot.slane %v458, %v466
    %470 = vmatprep.subr.mxu0 %v425
    %471 = vmatpush1.msra.mxu0 %v424
    %472 = vmatprep.subr.mxu0 %v423
    %473 = vmatpush1.msra.mxu0 %v422
    %474 = vmatprep.subr.mxu0 %v421
    %475 = vmatpush1.msra.mxu0 %v420
    %476 = vmatprep.subr.mxu0 %v419
    %477 = vmatpush1.msra.mxu0 %v418
    %478 = vmatprep.subr.mxu0 %v417
    %479 = vmatpush1.msra.mxu0 %v416
    %480 = vmatprep.subr.mxu0 %v415
    %481 = vmatpush1.msra.mxu0 %v414
    %482 = vmatprep.subr.mxu0 %v413
    %483 = vmatpush1.msra.mxu0 %v412
    %484 = vmatprep.subr.mxu0 %v411
    %485 = vmatpush1.msra.mxu0 %v410
    %486 = vmatprep.subr.mxu0 %v409
    %487 = vmatpush1.msra.mxu0 %v408
    %488 = vmatprep.subr.mxu0 %v407
    %489 = vmatpush1.msra.mxu0 %v406
    %490 = vmatprep.subr.mxu0 %v405
    %491 = vmatpush1.msra.mxu0 %v404
    %492 = vmatprep.subr.mxu0 %v403
    %493 = vmatpush1.msra.mxu0 %v402
    %494 = vmatprep.subr.mxu0 %v401
    %495 = vmatpush1.msra.mxu0 %v400
    %496 = vmatprep.subr.mxu0 %v399
    %497 = vmatpush1.msra.mxu0 %v398
    %498 = vmatprep.subr.mxu0 %v397
    %499 = vmatpush1.msra.mxu0 %v396
    %500 = vmatprep.subr.mxu0 %v395
    %501 = vmatpush1.msra.mxu0 %v394
    %502 = vmatprep.subr.mxu0 %v457
    %503 = vmatpush2.msra.mxu0 %v456
    %504 = vmatprep.subr.mxu0 %v455
    %505 = vmatpush2.msra.mxu0 %v454
    %506 = vmatprep.subr.mxu0 %v453
    %507 = vmatpush2.msra.mxu0 %v452
    %508 = vmatprep.subr.mxu0 %v451
    %509 = vmatpush2.msra.mxu0 %v450
    %510 = vmatprep.subr.mxu0 %v449
    %511 = vmatpush2.msra.mxu0 %v448
    %512 = vmatprep.subr.mxu0 %v447
    %513 = vmatpush2.msra.mxu0 %v446
    %514 = vmatprep.subr.mxu0 %v445
    %515 = vmatpush2.msra.mxu0 %v444
    %516 = vmatprep.subr.mxu0 %v443
    %517 = vmatpush2.msra.mxu0 %v442
    %518 = vmatprep.subr.mxu0 %v441
    %519 = vmatpush2.msra.mxu0 %v440
    %520 = vmatprep.subr.mxu0 %v439
    %521 = vmatpush2.msra.mxu0 %v438
    %522 = vmatprep.subr.mxu0 %v437
    %523 = vmatpush2.msra.mxu0 %v436
    %524 = vmatprep.subr.mxu0 %v435
    %525 = vmatpush2.msra.mxu0 %v434
    %526 = vmatprep.subr.mxu0 %v433
    %527 = vmatpush2.msra.mxu0 %v432
    %528 = vmatprep.subr.mxu0 %v431
    %529 = vmatpush2.msra.mxu0 %v430
    %530 = vmatprep.subr.mxu0 %v429
    %531 = vmatpush2.msra.mxu0 %v428
    %532 = vmatprep.subr.mxu0 %v427
    %533 = vmatpush2.msra.mxu0 %v426
    %534 = vmatprep.mubr.f32.mxu0 %v363
    %535 = vmatmul.mubr.f32.gmra.mxu0 %v362
    %v536 = vpop.f32.mrf.mxu0
    %v537 = vadd.f32 %v463, %v536
    %v538 = vpop.f32.mrf.mxu0
    %v539 = vadd.f32 %v467, %v538
    %540 = vmatprep.mubr.f32.mxu0 %v365
    %541 = vmatmul.mubr.f32.gmra.mxu0 %v364
    %v542 = vpop.f32.mrf.mxu0
    %v543 = vadd.f32 %v463, %v542
    %v544 = vpop.f32.mrf.mxu0
    %v545 = vadd.f32 %v467, %v544
    %546 = vmatprep.mubr.f32.mxu0 %v367
    %547 = vmatmul.mubr.f32.gmra.mxu0 %v366
    %v548 = vpop.f32.mrf.mxu0
    %v549 = vadd.f32 %v463, %v548
    %v550 = vpop.f32.mrf.mxu0
    %v551 = vadd.f32 %v467, %v550
    %552 = vmatprep.mubr.f32.mxu0 %v369
    %553 = vmatmul.mubr.f32.gmra.mxu0 %v368
    %v554 = vpop.f32.mrf.mxu0
    %v555 = vadd.f32 %v463, %v554
    %v556 = vpop.f32.mrf.mxu0
    %v557 = vadd.f32 %v467, %v556
    %558 = vmatprep.mubr.f32.mxu0 %v371
    %559 = vmatmul.mubr.f32.gmra.mxu0 %v370
    %v560 = vpop.f32.mrf.mxu0
    %v561 = vadd.f32 %v463, %v560
    %v562 = vpop.f32.mrf.mxu0
    %v563 = vadd.f32 %v467, %v562
    %564 = vmatprep.mubr.f32.mxu0 %v373
    %565 = vmatmul.mubr.f32.gmra.mxu0 %v372
    %v566 = vpop.f32.mrf.mxu0
    %v567 = vadd.f32 %v463, %v566
    %v568 = vpop.f32.mrf.mxu0
    %v569 = vadd.f32 %v467, %v568
    %570 = vmatprep.mubr.f32.mxu0 %v375
    %571 = vmatmul.mubr.f32.gmra.mxu0 %v374
    %v572 = vpop.f32.mrf.mxu0
    %v573 = vadd.f32 %v463, %v572
    %v574 = vpop.f32.mrf.mxu0
    %v575 = vadd.f32 %v467, %v574
    %576 = vmatprep.mubr.f32.mxu0 %v377
    %577 = vmatmul.mubr.f32.gmra.mxu0 %v376
    %v578 = vpop.f32.mrf.mxu0
    %v579 = vadd.f32 %v463, %v578
    %v580 = vpop.f32.mrf.mxu0
    %v581 = vadd.f32 %v467, %v580
    %582 = vmatprep.mubr.f32.mxu0 %v379
    %583 = vmatmul.mubr.f32.gmra.mxu0 %v378
    %v584 = vpop.f32.mrf.mxu0
    %v585 = vadd.f32 %v463, %v584
    %v586 = vpop.f32.mrf.mxu0
    %v587 = vadd.f32 %v467, %v586
    %588 = vmatprep.mubr.f32.mxu0 %v381
    %589 = vmatmul.mubr.f32.gmra.mxu0 %v380
    %v590 = vpop.f32.mrf.mxu0
    %v591 = vadd.f32 %v463, %v590
    %v592 = vpop.f32.mrf.mxu0
    %v593 = vadd.f32 %v467, %v592
    %594 = vmatprep.mubr.f32.mxu0 %v383
    %595 = vmatmul.mubr.f32.gmra.mxu0 %v382
    %v596 = vpop.f32.mrf.mxu0
    %v597 = vadd.f32 %v463, %v596
    %v598 = vpop.f32.mrf.mxu0
    %v599 = vadd.f32 %v467, %v598
    %600 = vmatprep.mubr.f32.mxu0 %v385
    %601 = vmatmul.mubr.f32.gmra.mxu0 %v384
    %v602 = vpop.f32.mrf.mxu0
    %v603 = vadd.f32 %v463, %v602
    %v604 = vpop.f32.mrf.mxu0
    %v605 = vadd.f32 %v467, %v604
    %606 = vmatprep.mubr.f32.mxu0 %v387
    %607 = vmatmul.mubr.f32.gmra.mxu0 %v386
    %v608 = vpop.f32.mrf.mxu0
    %v609 = vadd.f32 %v463, %v608
    %v610 = vpop.f32.mrf.mxu0
    %v611 = vadd.f32 %v467, %v610
    %612 = vmatprep.mubr.f32.mxu0 %v389
    %613 = vmatmul.mubr.f32.gmra.mxu0 %v388
    %v614 = vpop.f32.mrf.mxu0
    %v615 = vadd.f32 %v463, %v614
    %v616 = vpop.f32.mrf.mxu0
    %v617 = vadd.f32 %v467, %v616
    %618 = vmatprep.mubr.f32.mxu0 %v391
    %619 = vmatmul.mubr.f32.gmra.mxu0 %v390
    %v620 = vpop.f32.mrf.mxu0
    %v621 = vadd.f32 %v463, %v620
    %v622 = vpop.f32.mrf.mxu0
    %v623 = vadd.f32 %v467, %v622
    %624 = vmatprep.mubr.f32.mxu0 %v393
    %625 = vmatmul.mubr.f32.gmra.mxu0 %v392
    %v626 = vpop.f32.mrf.mxu0
    %v627 = vadd.f32 %v463, %v626
    %v628 = vpop.f32.mrf.mxu0
    %v629 = vadd.f32 %v467, %v628
    %630 = vdwg.mxu0
    %v631 = vadd.f32 %v537, 0.0
    %v632 = vadd.f32 %v539, 0.0
    %v633 = vmul.f32 %v631, 0.5
    %v634 = vmul.f32 %v632, 0.5
    %vm635 = vcmp.ge.f32.partialorder %v633, 1.0
    %vm636 = vcmp.ge.f32.partialorder %v634, 1.0
    %v637 = vsel %vm635, 1.0, 0.0
    %v638 = vsel %vm636, 1.0, 0.0
    %v639 = vsel %vm635, 0.0, %v633
    %v640 = vsel %vm636, 0.0, %v634
    %v641 = vadd.f32 %v637, 0.0
    %v642 = vadd.f32 %v638, 0.0
    %v643 = vmul.f32 %v641, 0.5
    %v644 = vmul.f32 %v642, 0.5
    %v645 = vadd.f32 %v639, %v543
    %v646 = vadd.f32 %v640, %v545
    %v647 = vmul.f32 %v645, 0.5
    %v648 = vmul.f32 %v646, 0.5
    %vm649 = vcmp.ge.f32.partialorder %v647, 1.0
    %vm650 = vcmp.ge.f32.partialorder %v648, 1.0
    %v651 = vsel %vm649, 1.0, 0.0
    %v652 = vsel %vm650, 1.0, 0.0
    %v653 = vsel %vm649, 0.0, %v647
    %v654 = vsel %vm650, 0.0, %v648
    %v655 = vadd.f32 %v643, %v651
    %v656 = vadd.f32 %v644, %v652
    %v657 = vmul.f32 %v655, 0.5
    %v658 = vmul.f32 %v656, 0.5
    %v659 = vadd.f32 %v653, %v549
    %v660 = vadd.f32 %v654, %v551
    %v661 = vmul.f32 %v659, 0.5
    %v662 = vmul.f32 %v660, 0.5
    %vm663 = vcmp.ge.f32.partialorder %v661, 1.0
    %vm664 = vcmp.ge.f32.partialorder %v662, 1.0
    %v665 = vsel %vm663, 1.0, 0.0
    %v666 = vsel %vm664, 1.0, 0.0
    %v667 = vsel %vm663, 0.0, %v661
    %v668 = vsel %vm664, 0.0, %v662
    %v669 = vadd.f32 %v657, %v665
    %v670 = vadd.f32 %v658, %v666
    %v671 = vmul.f32 %v669, 0.5
    %v672 = vmul.f32 %v670, 0.5
    %v673 = vadd.f32 %v667, %v555
    %v674 = vadd.f32 %v668, %v557
    %v675 = vmul.f32 %v673, 0.5
    %v676 = vmul.f32 %v674, 0.5
    %vm677 = vcmp.ge.f32.partialorder %v675, 1.0
    %vm678 = vcmp.ge.f32.partialorder %v676, 1.0
    %v679 = vsel %vm677, 1.0, 0.0
    %v680 = vsel %vm678, 1.0, 0.0
    %v681 = vsel %vm677, 0.0, %v675
    %v682 = vsel %vm678, 0.0, %v676
    %v683 = vadd.f32 %v671, %v679
    %v684 = vadd.f32 %v672, %v680
    %v685 = vmul.f32 %v683, 0.5
    %v686 = vmul.f32 %v684, 0.5
    %v687 = vadd.f32 %v681, %v561
    %v688 = vadd.f32 %v682, %v563
    %v689 = vmul.f32 %v687, 0.5
    %v690 = vmul.f32 %v688, 0.5
    %vm691 = vcmp.ge.f32.partialorder %v689, 1.0
    %vm692 = vcmp.ge.f32.partialorder %v690, 1.0
    %v693 = vsel %vm691, 1.0, 0.0
    %v694 = vsel %vm692, 1.0, 0.0
    %v695 = vsel %vm691, 0.0, %v689
    %v696 = vsel %vm692, 0.0, %v690
    %v697 = vadd.f32 %v685, %v693
    %v698 = vadd.f32 %v686, %v694
    %v699 = vmul.f32 %v697, 0.5
    %v700 = vmul.f32 %v698, 0.5
    %v701 = vadd.f32 %v695, %v567
    %v702 = vadd.f32 %v696, %v569
    %v703 = vmul.f32 %v701, 0.5
    %v704 = vmul.f32 %v702, 0.5
    %vm705 = vcmp.ge.f32.partialorder %v703, 1.0
    %vm706 = vcmp.ge.f32.partialorder %v704, 1.0
    %v707 = vsel %vm705, 1.0, 0.0
    %v708 = vsel %vm706, 1.0, 0.0
    %v709 = vsel %vm705, 0.0, %v703
    %v710 = vsel %vm706, 0.0, %v704
    %v711 = vadd.f32 %v699, %v707
    %v712 = vadd.f32 %v700, %v708
    %v713 = vmul.f32 %v711, 0.5
    %v714 = vmul.f32 %v712, 0.5
    %v715 = vadd.f32 %v709, %v573
    %v716 = vadd.f32 %v710, %v575
    %v717 = vmul.f32 %v715, 0.5
    %v718 = vmul.f32 %v716, 0.5
    %vm719 = vcmp.ge.f32.partialorder %v717, 1.0
    %vm720 = vcmp.ge.f32.partialorder %v718, 1.0
    %v721 = vsel %vm719, 1.0, 0.0
    %v722 = vsel %vm720, 1.0, 0.0
    %v723 = vsel %vm719, 0.0, %v717
    %v724 = vsel %vm720, 0.0, %v718
    %v725 = vadd.f32 %v713, %v721
    %v726 = vadd.f32 %v714, %v722
    %v727 = vmul.f32 %v725, 0.5
    %v728 = vmul.f32 %v726, 0.5
    %v729 = vadd.f32 %v723, %v579
    %v730 = vadd.f32 %v724, %v581
    %v731 = vmul.f32 %v729, 0.5
    %v732 = vmul.f32 %v730, 0.5
    %vm733 = vcmp.ge.f32.partialorder %v731, 1.0
    %vm734 = vcmp.ge.f32.partialorder %v732, 1.0
    %v735 = vsel %vm733, 1.0, 0.0
    %v736 = vsel %vm734, 1.0, 0.0
    %v737 = vsel %vm733, 0.0, %v731
    %v738 = vsel %vm734, 0.0, %v732
    %v739 = vadd.f32 %v727, %v735
    %v740 = vadd.f32 %v728, %v736
    %v741 = vmul.f32 %v739, 0.5
    %v742 = vmul.f32 %v740, 0.5
    %v743 = vadd.f32 %v737, %v585
    %v744 = vadd.f32 %v738, %v587
    %v745 = vmul.f32 %v743, 0.5
    %v746 = vmul.f32 %v744, 0.5
    %vm747 = vcmp.ge.f32.partialorder %v745, 1.0
    %vm748 = vcmp.ge.f32.partialorder %v746, 1.0
    %v749 = vsel %vm747, 1.0, 0.0
    %v750 = vsel %vm748, 1.0, 0.0
    %v751 = vsel %vm747, 0.0, %v745
    %v752 = vsel %vm748, 0.0, %v746
    %v753 = vadd.f32 %v741, %v749
    %v754 = vadd.f32 %v742, %v750
    %v755 = vmul.f32 %v753, 0.5
    %v756 = vmul.f32 %v754, 0.5
    %v757 = vadd.f32 %v751, %v591
    %v758 = vadd.f32 %v752, %v593
    %v759 = vmul.f32 %v757, 0.5
    %v760 = vmul.f32 %v758, 0.5
    %vm761 = vcmp.ge.f32.partialorder %v759, 1.0
    %vm762 = vcmp.ge.f32.partialorder %v760, 1.0
    %v763 = vsel %vm761, 1.0, 0.0
    %v764 = vsel %vm762, 1.0, 0.0
    %v765 = vsel %vm761, 0.0, %v759
    %v766 = vsel %vm762, 0.0, %v760
    %v767 = vadd.f32 %v755, %v763
    %v768 = vadd.f32 %v756, %v764
    %v769 = vmul.f32 %v767, 0.5
    %v770 = vmul.f32 %v768, 0.5
    %v771 = vadd.f32 %v765, %v597
    %v772 = vadd.f32 %v766, %v599
    %v773 = vmul.f32 %v771, 0.5
    %v774 = vmul.f32 %v772, 0.5
    %vm775 = vcmp.ge.f32.partialorder %v773, 1.0
    %vm776 = vcmp.ge.f32.partialorder %v774, 1.0
    %v777 = vsel %vm775, 1.0, 0.0
    %v778 = vsel %vm776, 1.0, 0.0
    %v779 = vsel %vm775, 0.0, %v773
    %v780 = vsel %vm776, 0.0, %v774
    %v781 = vadd.f32 %v769, %v777
    %v782 = vadd.f32 %v770, %v778
    %v783 = vmul.f32 %v781, 0.5
    %v784 = vmul.f32 %v782, 0.5
    %v785 = vadd.f32 %v779, %v603
    %v786 = vadd.f32 %v780, %v605
    %v787 = vmul.f32 %v785, 0.5
    %v788 = vmul.f32 %v786, 0.5
    %vm789 = vcmp.ge.f32.partialorder %v787, 1.0
    %vm790 = vcmp.ge.f32.partialorder %v788, 1.0
    %v791 = vsel %vm789, 1.0, 0.0
    %v792 = vsel %vm790, 1.0, 0.0
    %v793 = vsel %vm789, 0.0, %v787
    %v794 = vsel %vm790, 0.0, %v788
    %v795 = vadd.f32 %v783, %v791
    %v796 = vadd.f32 %v784, %v792
    %v797 = vmul.f32 %v795, 0.5
    %v798 = vmul.f32 %v796, 0.5
    %v799 = vadd.f32 %v793, %v609
    %v800 = vadd.f32 %v794, %v611
    %v801 = vmul.f32 %v799, 0.5
    %v802 = vmul.f32 %v800, 0.5
    %vm803 = vcmp.ge.f32.partialorder %v801, 1.0
    %vm804 = vcmp.ge.f32.partialorder %v802, 1.0
    %v805 = vsel %vm803, 1.0, 0.0
    %v806 = vsel %vm804, 1.0, 0.0
    %v807 = vsel %vm803, 0.0, %v801
    %v808 = vsel %vm804, 0.0, %v802
    %v809 = vadd.f32 %v797, %v805
    %v810 = vadd.f32 %v798, %v806
    %v811 = vmul.f32 %v809, 0.5
    %v812 = vmul.f32 %v810, 0.5
    %v813 = vadd.f32 %v807, %v615
    %v814 = vadd.f32 %v808, %v617
    %v815 = vmul.f32 %v813, 0.5
    %v816 = vmul.f32 %v814, 0.5
    %vm817 = vcmp.ge.f32.partialorder %v815, 1.0
    %vm818 = vcmp.ge.f32.partialorder %v816, 1.0
    %v819 = vsel %vm817, 1.0, 0.0
    %v820 = vsel %vm818, 1.0, 0.0
    %v821 = vsel %vm817, 0.0, %v815
    %v822 = vsel %vm818, 0.0, %v816
    %v823 = vadd.f32 %v811, %v819
    %v824 = vadd.f32 %v812, %v820
    %v825 = vmul.f32 %v823, 0.5
    %v826 = vmul.f32 %v824, 0.5
    %v827 = vadd.f32 %v821, %v621
    %v828 = vadd.f32 %v822, %v623
    %v829 = vmul.f32 %v827, 0.5
    %v830 = vmul.f32 %v828, 0.5
    %vm831 = vcmp.ge.f32.partialorder %v829, 1.0
    %vm832 = vcmp.ge.f32.partialorder %v830, 1.0
    %v833 = vsel %vm831, 1.0, 0.0
    %v834 = vsel %vm832, 1.0, 0.0
    %v835 = vsel %vm831, 0.0, %v829
    %v836 = vsel %vm832, 0.0, %v830
    %v837 = vadd.f32 %v825, %v833
    %v838 = vadd.f32 %v826, %v834
    %v839 = vmul.f32 %v837, 0.5
    %v840 = vmul.f32 %v838, 0.5
    %v841 = vadd.f32 %v835, %v627
    %v842 = vadd.f32 %v836, %v629
    %v843 = vmul.f32 %v841, 0.5
    %v844 = vmul.f32 %v842, 0.5
    %vm845 = vcmp.ge.f32.partialorder %v843, 1.0
    %vm846 = vcmp.ge.f32.partialorder %v844, 1.0
    %v847 = vsel %vm845, 1.0, 0.0
    %v848 = vsel %vm846, 1.0, 0.0
    %v849 = vadd.f32 %v839, %v847
    %v850 = vadd.f32 %v840, %v848
    %v851 = vmul.f32 %v849, 0.5
    %v852 = vmul.f32 %v850, 0.5
    %v853 = vld [vmem:[#allocation9] sm:$0xff]
    %v854 = vld [vmem:[#allocation9 + $0x8] sm:$0xff]
    %v855 = vld [vmem:[#allocation9 + $0x10] sm:$0xff]
    %v856 = vld [vmem:[#allocation9 + $0x18] sm:$0xff]
    %v857 = vld [vmem:[#allocation9 + $0x20] sm:$0xff]
    %v858 = vld [vmem:[#allocation9 + $0x28] sm:$0xff]
    %v859 = vld [vmem:[#allocation9 + $0x30] sm:$0xff]
    %v860 = vld [vmem:[#allocation9 + $0x38] sm:$0xff]
    %v861 = vld [vmem:[#allocation9 + $0x40] sm:$0xff]
    %v862 = vld [vmem:[#allocation9 + $0x48] sm:$0xff]
    %v863 = vld [vmem:[#allocation9 + $0x50] sm:$0xff]
    %v864 = vld [vmem:[#allocation9 + $0x58] sm:$0xff]
    %v865 = vld [vmem:[#allocation9 + $0x60] sm:$0xff]
    %v866 = vld [vmem:[#allocation9 + $0x68] sm:$0xff]
    %v867 = vld [vmem:[#allocation9 + $0x70] sm:$0xff]
    %v868 = vld [vmem:[#allocation9 + $0x78] sm:$0xff]
    %v869 = vld [vmem:[#allocation9 + $0x80] sm:$0xff]
    %v870 = vld [vmem:[#allocation9 + $0x88] sm:$0xff]
    %v871 = vld [vmem:[#allocation9 + $0x90] sm:$0xff]
    %v872 = vld [vmem:[#allocation9 + $0x98] sm:$0xff]
    %v873 = vld [vmem:[#allocation9 + $0xa0] sm:$0xff]
    %v874 = vld [vmem:[#allocation9 + $0xa8] sm:$0xff]
    %v875 = vld [vmem:[#allocation9 + $0xb0] sm:$0xff]
    %v876 = vld [vmem:[#allocation9 + $0xb8] sm:$0xff]
    %v877 = vld [vmem:[#allocation9 + $0xc0] sm:$0xff]
    %v878 = vld [vmem:[#allocation9 + $0xc8] sm:$0xff]
    %v879 = vld [vmem:[#allocation9 + $0xd0] sm:$0xff]
    %v880 = vld [vmem:[#allocation9 + $0xd8] sm:$0xff]
    %v881 = vld [vmem:[#allocation9 + $0xe0] sm:$0xff]
    %v882 = vld [vmem:[#allocation9 + $0xe8] sm:$0xff]
    %v883 = vld [vmem:[#allocation9 + $0xf0] sm:$0xff]
    %v884 = vld [vmem:[#allocation9 + $0xf8] sm:$0xff]
    %v885 = vld [vmem:[%s6] sm:$0x1]
    %v886 = vmul.f32 %v885, 0.99998474
    %v888 = vlaneseq
    %v889 = vshrl.u32 %v888, 7
    %v890 = vsub.s32 0, %v889
    %v891 = vrot.slane %v886, %v890
    %893 = vmatprep.subr.mxu0 0.0
    %894 = vmatpush1.msra.mxu0 %v868
    %895 = vmatprep.subr.mxu0 0.0
    %896 = vmatpush1.msra.mxu0 %v867
    %897 = vmatprep.subr.mxu0 0.0
    %898 = vmatpush1.msra.mxu0 %v866
    %899 = vmatprep.subr.mxu0 0.0
    %900 = vmatpush1.msra.mxu0 %v865
    %901 = vmatprep.subr.mxu0 0.0
    %902 = vmatpush1.msra.mxu0 %v864
    %903 = vmatprep.subr.mxu0 0.0
    %904 = vmatpush1.msra.mxu0 %v863
    %905 = vmatprep.subr.mxu0 0.0
    %906 = vmatpush1.msra.mxu0 %v862
    %907 = vmatprep.subr.mxu0 0.0
    %908 = vmatpush1.msra.mxu0 %v861
    %909 = vmatprep.subr.mxu0 0.0
    %910 = vmatpush1.msra.mxu0 %v860
    %911 = vmatprep.subr.mxu0 0.0
    %912 = vmatpush1.msra.mxu0 %v859
    %913 = vmatprep.subr.mxu0 0.0
    %914 = vmatpush1.msra.mxu0 %v858
    %915 = vmatprep.subr.mxu0 0.0
    %916 = vmatpush1.msra.mxu0 %v857
    %917 = vmatprep.subr.mxu0 0.0
    %918 = vmatpush1.msra.mxu0 %v856
    %919 = vmatprep.subr.mxu0 0.0
    %920 = vmatpush1.msra.mxu0 %v855
    %921 = vmatprep.subr.mxu0 0.0
    %922 = vmatpush1.msra.mxu0 %v854
    %923 = vmatprep.subr.mxu0 0.0
    %924 = vmatpush1.msra.mxu0 %v853
    %925 = vmatprep.subr.mxu0 0.0
    %926 = vmatpush2.msra.mxu0 %v884
    %927 = vmatprep.subr.mxu0 0.0
    %928 = vmatpush2.msra.mxu0 %v883
    %929 = vmatprep.subr.mxu0 0.0
    %930 = vmatpush2.msra.mxu0 %v882
    %931 = vmatprep.subr.mxu0 0.0
    %932 = vmatpush2.msra.mxu0 %v881
    %933 = vmatprep.subr.mxu0 0.0
    %934 = vmatpush2.msra.mxu0 %v880
    %935 = vmatprep.subr.mxu0 0.0
    %936 = vmatpush2.msra.mxu0 %v879
    %937 = vmatprep.subr.mxu0 0.0
    %938 = vmatpush2.msra.mxu0 %v878
    %939 = vmatprep.subr.mxu0 0.0
    %940 = vmatpush2.msra.mxu0 %v877
    %941 = vmatprep.subr.mxu0 0.0
    %942 = vmatpush2.msra.mxu0 %v876
    %943 = vmatprep.subr.mxu0 0.0
    %944 = vmatpush2.msra.mxu0 %v875
    %945 = vmatprep.subr.mxu0 0.0
    %946 = vmatpush2.msra.mxu0 %v874
    %947 = vmatprep.subr.mxu0 0.0
    %948 = vmatpush2.msra.mxu0 %v873
    %949 = vmatprep.subr.mxu0 0.0
    %950 = vmatpush2.msra.mxu0 %v872
    %951 = vmatprep.subr.mxu0 0.0
    %952 = vmatpush2.msra.mxu0 %v871
    %953 = vmatprep.subr.mxu0 0.0
    %954 = vmatpush2.msra.mxu0 %v870
    %955 = vmatprep.subr.mxu0 0.0
    %956 = vmatpush2.msra.mxu0 %v869
    %957 = vmatprep.mubr.f32.mxu0 %v852
    %958 = vmatmul.mubr.f32.gmra.mxu0 %v851
    %v959 = vpop.f32.mrf.mxu0
    %v960 = vadd.f32 %v891, %v959
    %v961 = vpop.f32.mrf.mxu0
    %962 = vdwg.mxu0
    %v963 = vtanh.pop %v960
    %964 = vst [vmem:[#allocation11] sm:$0xff] %v963
    // Predicated region
    $region46: #{tpu_custom_call.1} parent=1 // pred_check
      _
    $region47: #{tpu_custom_call.1} parent=1 // pred_check_branch
      %966 = sbr.rel (0) target = $region49
    $region48: #{tpu_custom_call.1} parent=1 // pred_region
      %s968 = ssub.s32 128, 128
      %969 = vsyncadd [#allocation5], %s968
      %s971 = sshll.u32 [#allocation11], 4
      %s972 = int_to_ptr.vmem [resolvable:$true] %s971
      %974 = dma.vmem_to_hbm [thread:$0]  %s972, 128, %s7, [#allocation5]
    $region49: #{tpu_custom_call.1} parent=1 // pred_fallthru
      _
    // Predicated region
    $region50: #{tpu_custom_call.1} parent=1 // pred_check
      _
    $region51: #{tpu_custom_call.1} parent=1 // pred_check_branch
      %976 = sbr.rel (0) target = $region53
    $region52: #{tpu_custom_call.1} parent=1 // pred_region
      %977 = dma.done [#allocation5], 128
    $region53: #{tpu_custom_call.1} parent=1 // pred_fallthru
      _
    %978 = vsyncpa [#allocation4], 1
    %979 = vsyncpa [#allocation7], 1
    %980 = vsyncpa [#allocation10], 1
    %981 = vsyncpa [#allocation5], 1

</llo_original>
